<compile_context>
chip_gen: v6e
topology: v6e:2x2x1
jax: 0.10.0
libtpu: 0.0.40
codegen_flags: <defaults>
</compile_context>

<pallas_src>
import jax
import jax.numpy as jnp
from jax.experimental import pallas as pl
from jax.experimental.pallas import tpu as pltpu

# ---- static dimensions implied by the module --------------------------------
C0, L0 = 16, 49          # input channels / length after view
C1, K0 = 41, 36          # f0
C2, K1 = 21, 10          # f2
C3, K2 = 10, 5           # f4
L1 = L0 - K0 + 1         # 14
L2 = L1 - K1 + 1         # 5
L3 = L2 - K2 + 1         # 1

F0 = C0 * L0             # 784  (flattened NCW features in)
F1 = C1 * L1             # 574
F2 = C2 * L2             # 105
F3 = C3 * L3             # 10

# Lane-clean padded feature widths (multiples of 128).
F1P = 640                # 5 * 128
F2P = 128
F3P = 128

TB_MAX = 512             # max batch rows per grid step


def _round_up(n, m):
    return ((n + m - 1) // m) * m


def _cdiv(a, b):
    return -(-a // b)


def _dense_conv_weight(w, l_in):
    """Unroll a PyTorch Conv1d weight (Cout, Cin, K) into a dense matrix
    W of shape (Cin*l_in, Cout*l_out) acting on NCW-flattened activations
    (feature index = channel * length + position):
        W[c*l_in + l, o*l_out + t] = w[o, c, l - t]   if 0 <= l - t < K else 0."""
    c_out, c_in, k = w.shape
    l_out = l_in - k + 1
    l_idx = jnp.arange(l_in)[:, None]          # (l_in, 1)
    t_idx = jnp.arange(l_out)[None, :]         # (1, l_out)
    kk = l_idx - t_idx                         # (l_in, l_out)
    valid = (kk >= 0) & (kk < k)
    wk = jnp.take(w, jnp.clip(kk, 0, k - 1), axis=2)       # (Cout, Cin, l_in, l_out)
    wk = jnp.where(valid[None, None, :, :], wk, 0.0)
    # -> (Cin, l_in, Cout, l_out) -> (Cin*l_in, Cout*l_out)
    return jnp.transpose(wk, (1, 2, 0, 3)).reshape(c_in * l_in, c_out * l_out)


def pack_params(params, wdtype=jnp.bfloat16):
    """One-time packing of PyTorch Conv1d params into lane-padded, bf16 GEMM
    matrices for the kernel.  Call once and reuse (hoisted out of forward)."""
    w0, b0, w1, w2 = params
    W0 = _dense_conv_weight(w0.astype(jnp.float32), L0)            # (784, 574)
    W0 = jnp.pad(W0, ((0, 0), (0, F1P - F1))).astype(wdtype)       # (784, 640)
    b0d = jnp.pad(jnp.repeat(b0.astype(jnp.float32), L1),
                  (0, F1P - F1)).reshape(1, F1P)                   # (1, 640) f32
    W1 = _dense_conv_weight(w1.astype(jnp.float32), L1)            # (574, 105)
    W1 = jnp.pad(W1, ((0, F1P - F1), (0, F2P - F2))).astype(wdtype)  # (640, 128)
    W2 = _dense_conv_weight(w2.astype(jnp.float32), L2)            # (105, 10)
    W2 = jnp.pad(W2, ((0, F2P - F2), (0, F3P - F3))).astype(wdtype)  # (128, 128)
    return W0, b0d, W1, W2


# ---- kernel ------------------------------------------------------------------
def conv1dsigmoid7_kernel(x_ref, w0_ref, b0_ref, w1_ref, w2_ref, o_ref):
    # x_ref: (TB, 784) bf16 — TB batch rows, NCW-flattened features.
    x = x_ref[...]

    # f0 + f1: (TB,784)x(784,640) GEMM, bias, sigmoid (all non-matmul math f32).
    z0 = jnp.dot(x, w0_ref[...], preferred_element_type=jnp.float32) + b0_ref[...]
    h0 = (0.5 * jnp.tanh(0.5 * z0) + 0.5).astype(jnp.bfloat16)     # (TB, 640)

    # f2 + f3: (TB,640)x(640,128) GEMM, sigmoid.
    z1 = jnp.dot(h0, w1_ref[...], preferred_element_type=jnp.float32)
    h1 = (0.5 * jnp.tanh(0.5 * z1) + 0.5).astype(jnp.bfloat16)     # (TB, 128)

    # f4: (TB,128)x(128,128) GEMM -> logits in lanes 0..9, zeros in 10..127.
    z2 = jnp.dot(h1, w2_ref[...], preferred_element_type=jnp.float32)  # (TB, 128) f32

    # f5: LogSoftmax over the 10 real classes (masked lane reduction).
    lane = jax.lax.broadcasted_iota(jnp.int32, z2.shape, 1)
    valid = lane < F3
    m = jnp.max(jnp.where(valid, z2, -jnp.inf), axis=-1, keepdims=True)
    s = jnp.sum(jnp.where(valid, jnp.exp(z2 - m), 0.0), axis=-1, keepdims=True)
    lse = jnp.log(s) + m
    o_ref[...] = jnp.where(valid, z2 - lse, 0.0).astype(o_ref.dtype)


# ---- wrapper -----------------------------------------------------------------
def conv1dsigmoid_7(x, packed):
    """x: any shape with B*16*49 elements (e.g. (B,1,28,28)); packed = pack_params(params).
    Returns (B, 10) log-probabilities (f32)."""
    W0, b0d, W1, W2 = packed
    B = x.shape[0]

    # NCW flatten is just a reshape of the contiguous input (matches x.view(B,16,49)).
    xf = x.reshape(B, F0).astype(jnp.bfloat16)                     # (B, 784) bf16

    # Batch tiling: split the batch evenly into `steps` slabs of tb rows (tb a
    # multiple of 8, <= ~TB_MAX). Force >= 2 steps once B >= 16 so both v7x
    # TensorCores get work (no-op on single-TC v5e/v6e).
    steps = max(1, _cdiv(B, TB_MAX))
    if B >= 16:
        steps = max(steps, 2)
    tb = _round_up(_cdiv(B, steps), 8)
    b_pad = tb * steps
    if b_pad != B:
        xf = jnp.pad(xf, ((0, b_pad - B), (0, 0)))

    out = pl.pallas_call(
        conv1dsigmoid7_kernel,
        out_shape=jax.ShapeDtypeStruct((b_pad, F3P), jnp.float32),
        grid_spec=pltpu.PrefetchScalarGridSpec(
            num_scalar_prefetch=0,
            grid=(steps,),
            in_specs=[
                pl.BlockSpec((tb, F0), lambda i: (i, 0)),    # x slab (bf16)
                pl.BlockSpec((F0, F1P), lambda i: (0, 0)),   # W0 (grid-invariant)
                pl.BlockSpec((1, F1P), lambda i: (0, 0)),    # bias0 (f32)
                pl.BlockSpec((F1P, F2P), lambda i: (0, 0)),  # W1
                pl.BlockSpec((F2P, F3P), lambda i: (0, 0)),  # W2
            ],
            out_specs=pl.BlockSpec((tb, F3P), lambda i: (i, 0)),   # lane-dense out
        ),
        compiler_params=pltpu.CompilerParams(
            dimension_semantics=("parallel",)),
    )(xf, W0, b0d, W1, W2)
    return out[:B, :F3]


# ---- pure-JAX reference (mirrors the PyTorch forward, f32) ---------------------
def reference(x, params):
    w0, b0, w1, w2 = params
    B = x.shape[0]
    h = x.reshape(B, C0, L0).astype(jnp.float32)

    def conv1d(h, w, b=None):
        out = jax.lax.conv_general_dilated(
            h, w.astype(jnp.float32), window_strides=(1,), padding="VALID",
            dimension_numbers=("NCH", "OIH", "NCH"))
        if b is not None:
            out = out + b.astype(jnp.float32)[None, :, None]
        return out

    h = jax.nn.sigmoid(conv1d(h, w0, b0))
    h = jax.nn.sigmoid(conv1d(h, w1))
    h = conv1d(h, w2)
    z = h.reshape(B, C3)
    return jax.nn.log_softmax(z, axis=1)


def init_params(key):
    """Deterministic synthetic parameters in PyTorch Conv1d layout (Cout, Cin, K)."""
    k0, kb, k1, k2 = jax.random.split(key, 4)
    s0 = 1.0 / (C0 * K0) ** 0.5
    s1 = 1.0 / (C1 * K1) ** 0.5
    s2 = 1.0 / (C2 * K2) ** 0.5
    w0 = jax.random.uniform(k0, (C1, C0, K0), jnp.float32, -s0, s0)
    b0 = jax.random.uniform(kb, (C1,), jnp.float32, -s0, s0)
    w1 = jax.random.uniform(k1, (C2, C1, K1), jnp.float32, -s1, s1)
    w2 = jax.random.uniform(k2, (C3, C2, K2), jnp.float32, -s2, s2)
    return (w0, b0, w1, w2)


if __name__ == "__main__":
    key = jax.random.PRNGKey(0)
    kx, kp = jax.random.split(key)
    # MNIST-like input: (B, 1, 28, 28); 1*28*28 = 784 = 16*49 as the view requires.
    x = jax.random.normal(kx, (2, 1, 28, 28), jnp.float32)
    params = init_params(kp)
    packed = pack_params(params)     # one-time weight packing (hoisted out of forward)

    out = jax.block_until_ready(conv1dsigmoid_7(x, packed))
    ref = jax.block_until_ready(reference(x, params))

    assert out.shape == (2, 10), out.shape
    # bf16 MXU inputs with f32 accumulation: tolerance relaxed vs. pure-f32.
    assert jnp.allclose(out, ref, atol=5e-2, rtol=5e-2), (
        "mismatch vs reference", float(jnp.max(jnp.abs(out - ref))))
    print("KERNEL_OK")
</pallas_src>

<mosaic_0001>
module attributes {stable_mosaic.version = 11 : i64} {
  func.func @conv1dsigmoid7_kernel(%arg0: i32, %arg1: memref<8x784xbf16, #tpu.memory_space<vmem>>, %arg2: memref<784x640xbf16, #tpu.memory_space<vmem>>, %arg3: memref<1x640xf32, #tpu.memory_space<vmem>>, %arg4: memref<640x128xbf16, #tpu.memory_space<vmem>>, %arg5: memref<128x128xbf16, #tpu.memory_space<vmem>>, %arg6: memref<8x128xf32, #tpu.memory_space<vmem>>) attributes {dimension_semantics = [#tpu.dimension_semantics<parallel>], iteration_bounds = array<i64: 1>, scalar_prefetch = 0 : i64, scratch_operands = 0 : i64, tpu.core_type = #tpu.core_type<tc>, window_params = [{transform_indices = @transform_0, window_bounds = array<i64: 8, 784>}, {pipeline_mode = #tpu.pipeline_mode<synchronous>, transform_indices = @transform_1, window_bounds = array<i64: 784, 640>}, {pipeline_mode = #tpu.pipeline_mode<synchronous>, transform_indices = @transform_2, window_bounds = array<i64: 1, 640>}, {pipeline_mode = #tpu.pipeline_mode<synchronous>, transform_indices = @transform_3, window_bounds = array<i64: 640, 128>}, {pipeline_mode = #tpu.pipeline_mode<synchronous>, transform_indices = @transform_4, window_bounds = array<i64: 128, 128>}, {transform_indices = @transform_5, window_bounds = array<i64: 8, 128>}]} {
    %c0 = arith.constant 0 : index
    %c0_0 = arith.constant 0 : index
    %0 = vector.load %arg1[%c0, %c0_0] : memref<8x784xbf16, #tpu.memory_space<vmem>>, vector<8x784xbf16>
    %c0_1 = arith.constant 0 : index
    %c0_2 = arith.constant 0 : index
    %1 = vector.load %arg2[%c0_1, %c0_2] : memref<784x640xbf16, #tpu.memory_space<vmem>>, vector<784x640xbf16>
    %cst = arith.constant dense<0.000000e+00> : vector<8x640xf32>
    %2 = tpu.matmul %0, %1, %cst {dimension_numbers = #tpu.dot_dimension_numbers<[1], [0], [0], [1], [0, 0, 1, 1], [], []>} : vector<8x784xbf16>, vector<784x640xbf16>, vector<8x640xf32> -> vector<8x640xf32>
    %c0_3 = arith.constant 0 : index
    %c0_4 = arith.constant 0 : index
    %3 = vector.load %arg3[%c0_3, %c0_4] : memref<1x640xf32, #tpu.memory_space<vmem>>, vector<1x640xf32>
    %4 = vector.broadcast %3 : vector<1x640xf32> to vector<8x640xf32>
    %5 = arith.addf %2, %4 : vector<8x640xf32>
    %cst_5 = arith.constant 5.000000e-01 : f32
    %6 = vector.broadcast %cst_5 : f32 to vector<8x640xf32>
    %7 = arith.mulf %6, %5 : vector<8x640xf32>
    %8 = math.tanh %7 : vector<8x640xf32>
    %cst_6 = arith.constant 5.000000e-01 : f32
    %9 = vector.broadcast %cst_6 : f32 to vector<8x640xf32>
    %10 = arith.mulf %9, %8 : vector<8x640xf32>
    %cst_7 = arith.constant 5.000000e-01 : f32
    %11 = vector.broadcast %cst_7 : f32 to vector<8x640xf32>
    %12 = arith.addf %10, %11 : vector<8x640xf32>
    %13 = arith.truncf %12 : vector<8x640xf32> to vector<8x640xbf16>
    %c0_8 = arith.constant 0 : index
    %c0_9 = arith.constant 0 : index
    %14 = vector.load %arg4[%c0_8, %c0_9] : memref<640x128xbf16, #tpu.memory_space<vmem>>, vector<640x128xbf16>
    %cst_10 = arith.constant dense<0.000000e+00> : vector<8x128xf32>
    %15 = tpu.matmul %13, %14, %cst_10 {dimension_numbers = #tpu.dot_dimension_numbers<[1], [0], [0], [1], [0, 0, 1, 1], [], []>} : vector<8x640xbf16>, vector<640x128xbf16>, vector<8x128xf32> -> vector<8x128xf32>
    %cst_11 = arith.constant 5.000000e-01 : f32
    %16 = vector.broadcast %cst_11 : f32 to vector<8x128xf32>
    %17 = arith.mulf %16, %15 : vector<8x128xf32>
    %18 = math.tanh %17 : vector<8x128xf32>
    %cst_12 = arith.constant 5.000000e-01 : f32
    %19 = vector.broadcast %cst_12 : f32 to vector<8x128xf32>
    %20 = arith.mulf %19, %18 : vector<8x128xf32>
    %cst_13 = arith.constant 5.000000e-01 : f32
    %21 = vector.broadcast %cst_13 : f32 to vector<8x128xf32>
    %22 = arith.addf %20, %21 : vector<8x128xf32>
    %23 = arith.truncf %22 : vector<8x128xf32> to vector<8x128xbf16>
    %c0_14 = arith.constant 0 : index
    %c0_15 = arith.constant 0 : index
    %24 = vector.load %arg5[%c0_14, %c0_15] : memref<128x128xbf16, #tpu.memory_space<vmem>>, vector<128x128xbf16>
    %cst_16 = arith.constant dense<0.000000e+00> : vector<8x128xf32>
    %25 = tpu.matmul %23, %24, %cst_16 {dimension_numbers = #tpu.dot_dimension_numbers<[1], [0], [0], [1], [0, 0, 1, 1], [], []>} : vector<8x128xbf16>, vector<128x128xbf16>, vector<8x128xf32> -> vector<8x128xf32>
    %26 = tpu.iota {dimensions = array<i32: 1>} : vector<8x128xi32>
    %c10_i32 = arith.constant 10 : i32
    %27 = vector.broadcast %c10_i32 : i32 to vector<8x128xi32>
    %28 = arith.cmpi slt, %26, %27 : vector<8x128xi32>
    %cst_17 = arith.constant 0xFF800000 : f32
    %29 = vector.broadcast %cst_17 : f32 to vector<8x128xf32>
    %30 = arith.select %28, %25, %29 : vector<8x128xi1>, vector<8x128xf32>
    %cst_18 = arith.constant dense<0xFF800000> : vector<8xf32>
    %31 = vector.multi_reduction <maximumf>, %30, %cst_18 [1] : vector<8x128xf32> to vector<8xf32>
    %32 = vector.shape_cast %31 : vector<8xf32> to vector<8x1xf32>
    %33 = vector.broadcast %32 : vector<8x1xf32> to vector<8x128xf32>
    %34 = arith.subf %25, %33 : vector<8x128xf32>
    %35 = math.exp %34 : vector<8x128xf32>
    %cst_19 = arith.constant 0.000000e+00 : f32
    %36 = vector.broadcast %cst_19 : f32 to vector<8x128xf32>
    %37 = arith.select %28, %35, %36 : vector<8x128xi1>, vector<8x128xf32>
    %cst_20 = arith.constant dense<0.000000e+00> : vector<8xf32>
    %38 = vector.multi_reduction <add>, %37, %cst_20 [1] : vector<8x128xf32> to vector<8xf32>
    %39 = vector.shape_cast %38 : vector<8xf32> to vector<8x1xf32>
    %40 = math.log %39 : vector<8x1xf32>
    %41 = arith.addf %40, %32 : vector<8x1xf32>
    %42 = vector.broadcast %41 : vector<8x1xf32> to vector<8x128xf32>
    %43 = arith.subf %25, %42 : vector<8x128xf32>
    %cst_21 = arith.constant 0.000000e+00 : f32
    %44 = vector.broadcast %cst_21 : f32 to vector<8x128xf32>
    %45 = arith.select %28, %43, %44 : vector<8x128xi1>, vector<8x128xf32>
    %c0_22 = arith.constant 0 : index
    %c0_23 = arith.constant 0 : index
    %46 = vector.load %arg6[%c0_22, %c0_23] : memref<8x128xf32, #tpu.memory_space<vmem>>, vector<8x128xf32>
    tpu.vector_store %arg6[%c0_22, %c0_23], %45 {strides = array<i32>} : memref<8x128xf32, #tpu.memory_space<vmem>>, vector<8x128xf32>,
    return
  }
  func.func @transform_0(%arg0: i32) -> (i32, i32) {
    %c0_i32 = arith.constant 0 : i32
    %c0_i32_0 = arith.constant 0 : i32
    return %arg0, %c0_i32 : i32, i32
  }
  func.func @transform_1(%arg0: i32) -> (i32, i32) {
    %c0_i32 = arith.constant 0 : i32
    %c0_i32_0 = arith.constant 0 : i32
    %c0_i32_1 = arith.constant 0 : i32
    return %c0_i32, %c0_i32_0 : i32, i32
  }
  func.func @transform_2(%arg0: i32) -> (i32, i32) {
    %c0_i32 = arith.constant 0 : i32
    %c0_i32_0 = arith.constant 0 : i32
    %c0_i32_1 = arith.constant 0 : i32
    return %c0_i32, %c0_i32_0 : i32, i32
  }
  func.func @transform_3(%arg0: i32) -> (i32, i32) {
    %c0_i32 = arith.constant 0 : i32
    %c0_i32_0 = arith.constant 0 : i32
    %c0_i32_1 = arith.constant 0 : i32
    return %c0_i32, %c0_i32_0 : i32, i32
  }
  func.func @transform_4(%arg0: i32) -> (i32, i32) {
    %c0_i32 = arith.constant 0 : i32
    %c0_i32_0 = arith.constant 0 : i32
    %c0_i32_1 = arith.constant 0 : i32
    return %c0_i32, %c0_i32_0 : i32, i32
  }
  func.func @transform_5(%arg0: i32) -> (i32, i32) {
    %c0_i32 = arith.constant 0 : i32
    %c0_i32_0 = arith.constant 0 : i32
    return %arg0, %c0_i32 : i32, i32
  }
}

</mosaic_0001>

<llo_original>
// kernel: tpu_custom_call.1
$region0: #{tpu_custom_call.1}
  #allocation0 [shape = 'u32[]', space=smem, size = 0x4, offset = 0x4, fixed_abs, tag = 'smem constant byte address 0x4 - core index']
  #allocation1 [shape = 'u32[144,128]{1,0:T(1,128)}', space=vmem, size = 0x12000, scoped, tag = 'internal scratch']
  %s0 = inlined_call_operand.hbm [shape: bf16[8,784], index: 0, kind: input, shape index: {}]
  %s1 = inlined_call_operand.hbm [shape: bf16[784,640], index: 1, kind: input, shape index: {}]
  %s2 = inlined_call_operand.hbm [shape: f32[1,640], index: 2, kind: input, shape index: {}]
  %s3 = inlined_call_operand.hbm [shape: bf16[640,128], index: 3, kind: input, shape index: {}]
  %s4 = inlined_call_operand.hbm [shape: bf16[128,128], index: 4, kind: input, shape index: {}]
  %s5 = inlined_call_operand.hbm [shape: f32[8,128], index: 5, kind: output, shape index: {}]
  %s6 = sld [smem:[#allocation0]]
  $region50: #{tpu_custom_call.1} parent=0
    _
  %s8 = ssub.s32 1, %s6
  %s9 = scalar_select 0, %s8, %s6
  $region1: #{tpu_custom_call.1} parent=0
    #allocation2 [shape = 'u8[14336]{0}', space=vmem, size = 0x3800, scoped, tag = 'input window, operand 0, single buffered']
    #allocation3 [shape = 's32[1]{0}', space=sflag, size = 0x4, scoped, tag = 'scoped memory for tpu_custom_call.1']
    #allocation4 [shape = 's32[1]{0}', space=sflag, size = 0x4, scoped, tag = 'scoped memory for tpu_custom_call.1']
    #allocation5 [shape = 'u8[1003520]{0}', space=vmem, size = 0xf5000, scoped, tag = 'input window, operand 1, single buffered']
    #allocation6 [shape = 's32[1]{0}', space=sflag, size = 0x4, scoped, tag = 'scoped memory for tpu_custom_call.1']
    #allocation7 [shape = 'u8[2560]{0}', space=vmem, size = 0xc00, scoped, tag = 'input window, operand 2, single buffered']
    #allocation8 [shape = 'u8[163840]{0}', space=vmem, size = 0x28000, scoped, tag = 'input window, operand 3, single buffered']
    #allocation9 [shape = 's32[1]{0}', space=sflag, size = 0x4, scoped, tag = 'scoped memory for tpu_custom_call.1']
    #allocation10 [shape = 'u8[32768]{0}', space=vmem, size = 0x8000, scoped, tag = 'input window, operand 4, single buffered']
    #allocation11 [shape = 'u8[4096]{0}', space=vmem, size = 0x1000, scoped, tag = 'output window, operand 0, single buffered']
    %10 = vsyncpa [#allocation3], 0
    %11 = vsyncpa [#allocation6], 0
    %12 = vsyncpa [#allocation9], 0
    %13 = vsyncpa [#allocation4], 0
    // Predicated region
    $region2: #{tpu_custom_call.1} parent=1 // pred_check
      _
    $region3: #{tpu_custom_call.1} parent=1 // pred_check_branch
      %15 = sbr.rel (0) target = $region5
    $region4: #{tpu_custom_call.1} parent=1 // pred_region
      %s17 = ssub.s32 448, 448
      %18 = vsyncadd [#allocation3], %s17
      %s20 = sshll.u32 [#allocation2], 4
      %s21 = int_to_ptr.vmem [resolvable:$true] %s20
      %23 = dma.hbm_to_vmem [thread:$0]  %s0, 448, %s21, [#allocation3]
    $region5: #{tpu_custom_call.1} parent=1 // pred_fallthru
      _
    // Predicated region
    $region6: #{tpu_custom_call.1} parent=1 // pred_check
      _
    $region7: #{tpu_custom_call.1} parent=1 // pred_check_branch
      %25 = sbr.rel (0) target = $region9
    $region8: #{tpu_custom_call.1} parent=1 // pred_region
      %s27 = ssub.s32 31360, 31360
      %28 = vsyncadd [#allocation6], %s27
      %s29 = sshll.u32 [#allocation5], 4
      %s30 = int_to_ptr.vmem [resolvable:$true] %s29
      %35 = dma.hbm_to_vmem [thread:$0]  %s1, 31360, %s30, [#allocation6], 320, 320, 20
    $region9: #{tpu_custom_call.1} parent=1 // pred_fallthru
      _
    // Predicated region
    $region10: #{tpu_custom_call.1} parent=1 // pred_check
      _
    $region11: #{tpu_custom_call.1} parent=1 // pred_check_branch
      %37 = sbr.rel (0) target = $region13
    $region12: #{tpu_custom_call.1} parent=1 // pred_region
      %s39 = ssub.s32 80, 80
      %40 = vsyncadd [#allocation6], %s39
      %s42 = sshll.u32 [#allocation7], 4
      %s43 = int_to_ptr.vmem [resolvable:$true] %s42
      %45 = dma.hbm_to_vmem [thread:$0]  %s2, 80, %s43, [#allocation6]
    $region13: #{tpu_custom_call.1} parent=1 // pred_fallthru
      _
    // Predicated region
    $region14: #{tpu_custom_call.1} parent=1 // pred_check
      _
    $region15: #{tpu_custom_call.1} parent=1 // pred_check_branch
      %47 = sbr.rel (0) target = $region17
    $region16: #{tpu_custom_call.1} parent=1 // pred_region
      %s49 = ssub.s32 5120, 5120
      %50 = vsyncadd [#allocation9], %s49
      %s51 = sshll.u32 [#allocation8], 4
      %s52 = int_to_ptr.vmem [resolvable:$true] %s51
      %57 = dma.hbm_to_vmem [thread:$0]  %s3, 5120, %s52, [#allocation9], 64, 64, 4
    $region17: #{tpu_custom_call.1} parent=1 // pred_fallthru
      _
    // Predicated region
    $region18: #{tpu_custom_call.1} parent=1 // pred_check
      _
    $region19: #{tpu_custom_call.1} parent=1 // pred_check_branch
      %59 = sbr.rel (0) target = $region21
    $region20: #{tpu_custom_call.1} parent=1 // pred_region
      %s61 = ssub.s32 1024, 1024
      %62 = vsyncadd [#allocation9], %s61
      %s63 = sshll.u32 [#allocation10], 4
      %s64 = int_to_ptr.vmem [resolvable:$true] %s63
      %69 = dma.hbm_to_vmem [thread:$0]  %s4, 1024, %s64, [#allocation9], 64, 64, 4
    $region21: #{tpu_custom_call.1} parent=1 // pred_fallthru
      _
    // Predicated region
    $region22: #{tpu_custom_call.1} parent=1 // pred_check
      _
    $region23: #{tpu_custom_call.1} parent=1 // pred_check_branch
      %71 = sbr.rel (0) target = $region25
    $region24: #{tpu_custom_call.1} parent=1 // pred_region
      %72 = dma.done [#allocation3], 448
    $region25: #{tpu_custom_call.1} parent=1 // pred_fallthru
      _
    // Predicated region
    $region26: #{tpu_custom_call.1} parent=1 // pred_check
      _
    $region27: #{tpu_custom_call.1} parent=1 // pred_check_branch
      %74 = sbr.rel (0) target = $region29
    $region28: #{tpu_custom_call.1} parent=1 // pred_region
      %75 = dma.done [#allocation6], 31360
    $region29: #{tpu_custom_call.1} parent=1 // pred_fallthru
      _
    // Predicated region
    $region30: #{tpu_custom_call.1} parent=1 // pred_check
      _
    $region31: #{tpu_custom_call.1} parent=1 // pred_check_branch
      %77 = sbr.rel (0) target = $region33
    $region32: #{tpu_custom_call.1} parent=1 // pred_region
      %78 = dma.done [#allocation6], 80
    $region33: #{tpu_custom_call.1} parent=1 // pred_fallthru
      _
    // Predicated region
    $region34: #{tpu_custom_call.1} parent=1 // pred_check
      _
    $region35: #{tpu_custom_call.1} parent=1 // pred_check_branch
      %80 = sbr.rel (0) target = $region37
    $region36: #{tpu_custom_call.1} parent=1 // pred_region
      %81 = dma.done [#allocation9], 5120
    $region37: #{tpu_custom_call.1} parent=1 // pred_fallthru
      _
    // Predicated region
    $region38: #{tpu_custom_call.1} parent=1 // pred_check
      _
    $region39: #{tpu_custom_call.1} parent=1 // pred_check_branch
      %83 = sbr.rel (0) target = $region41
    $region40: #{tpu_custom_call.1} parent=1 // pred_region
      %84 = dma.done [#allocation9], 1024
    $region41: #{tpu_custom_call.1} parent=1 // pred_fallthru
      _
    %v86 = vld [vmem:[#allocation2] sm:$0xff]
    %v87 = vld [vmem:[#allocation2 + $0x8] sm:$0xff]
    %v88 = vld [vmem:[#allocation2 + $0x10] sm:$0xff]
    %v89 = vld [vmem:[#allocation2 + $0x18] sm:$0xf]
    %v90 = vld [vmem:[#allocation5] sm:$0xff]
    %v91 = vld [vmem:[#allocation5 + $0x8] sm:$0xff]
    %v92 = vld [vmem:[#allocation5 + $0x10] sm:$0xf]
    %v93 = vld [vmem:[#allocation5 + $0x14] sm:$0xff]
    %v94 = vld [vmem:[#allocation5 + $0x1c] sm:$0xff]
    %v95 = vld [vmem:[#allocation5 + $0x24] sm:$0xf]
    %v96 = vld [vmem:[#allocation5 + $0x28] sm:$0xff]
    %v97 = vld [vmem:[#allocation5 + $0x30] sm:$0xff]
    %v98 = vld [vmem:[#allocation5 + $0x38] sm:$0xf]
    %v99 = vld [vmem:[#allocation5 + $0x3c] sm:$0xff]
    %v100 = vld [vmem:[#allocation5 + $0x44] sm:$0xff]
    %v101 = vld [vmem:[#allocation5 + $0x4c] sm:$0xf]
    %v102 = vld [vmem:[#allocation5 + $0x50] sm:$0xff]
    %v103 = vld [vmem:[#allocation5 + $0x58] sm:$0xff]
    %v104 = vld [vmem:[#allocation5 + $0x60] sm:$0xf]
    %v105 = vld [vmem:[#allocation5 + $0x64] sm:$0xff]
    %v106 = vld [vmem:[#allocation5 + $0x6c] sm:$0xff]
    %v107 = vld [vmem:[#allocation5 + $0x74] sm:$0xf]
    %v108 = vld [vmem:[#allocation5 + $0x78] sm:$0xff]
    %v109 = vld [vmem:[#allocation5 + $0x80] sm:$0xff]
    %v110 = vld [vmem:[#allocation5 + $0x88] sm:$0xf]
    %v111 = vld [vmem:[#allocation5 + $0x8c] sm:$0xff]
    %v112 = vld [vmem:[#allocation5 + $0x94] sm:$0xff]
    %v113 = vld [vmem:[#allocation5 + $0x9c] sm:$0xf]
    %v114 = vld [vmem:[#allocation5 + $0xa0] sm:$0xff]
    %v115 = vld [vmem:[#allocation5 + $0xa8] sm:$0xff]
    %v116 = vld [vmem:[#allocation5 + $0xb0] sm:$0xf]
    %v117 = vld [vmem:[#allocation5 + $0xb4] sm:$0xff]
    %v118 = vld [vmem:[#allocation5 + $0xbc] sm:$0xff]
    %v119 = vld [vmem:[#allocation5 + $0xc4] sm:$0xf]
    %v120 = vld [vmem:[#allocation5 + $0xc8] sm:$0xff]
    %v121 = vld [vmem:[#allocation5 + $0xd0] sm:$0xff]
    %v122 = vld [vmem:[#allocation5 + $0xd8] sm:$0xf]
    %v123 = vld [vmem:[#allocation5 + $0xdc] sm:$0xff]
    %v124 = vld [vmem:[#allocation5 + $0xe4] sm:$0xff]
    %v125 = vld [vmem:[#allocation5 + $0xec] sm:$0xf]
    %v126 = vld [vmem:[#allocation5 + $0xf0] sm:$0xff]
    %v127 = vld [vmem:[#allocation5 + $0xf8] sm:$0xff]
    %v128 = vld [vmem:[#allocation5 + $0x100] sm:$0xf]
    %v129 = vld [vmem:[#allocation5 + $0x104] sm:$0xff]
    %v130 = vld [vmem:[#allocation5 + $0x10c] sm:$0xff]
    %v131 = vld [vmem:[#allocation5 + $0x114] sm:$0xf]
    %v132 = vld [vmem:[#allocation5 + $0x118] sm:$0xff]
    %v133 = vld [vmem:[#allocation5 + $0x120] sm:$0xff]
    %v134 = vld [vmem:[#allocation5 + $0x128] sm:$0xf]
    %v135 = vld [vmem:[#allocation5 + $0x12c] sm:$0xff]
    %v136 = vld [vmem:[#allocation5 + $0x134] sm:$0xff]
    %v137 = vld [vmem:[#allocation5 + $0x13c] sm:$0xf]
    %v138 = vld [vmem:[#allocation5 + $0x140] sm:$0xff]
    %v139 = vld [vmem:[#allocation5 + $0x148] sm:$0xff]
    %v140 = vld [vmem:[#allocation5 + $0x150] sm:$0xf]
    %v141 = vld [vmem:[#allocation5 + $0x154] sm:$0xff]
    %v142 = vld [vmem:[#allocation5 + $0x15c] sm:$0xff]
    %v143 = vld [vmem:[#allocation5 + $0x164] sm:$0xf]
    %v144 = vld [vmem:[#allocation5 + $0x168] sm:$0xff]
    %v145 = vld [vmem:[#allocation5 + $0x170] sm:$0xff]
    %v146 = vld [vmem:[#allocation5 + $0x178] sm:$0xf]
    %v147 = vld [vmem:[#allocation5 + $0x17c] sm:$0xff]
    %v148 = vld [vmem:[#allocation5 + $0x184] sm:$0xff]
    %v149 = vld [vmem:[#allocation5 + $0x18c] sm:$0xf]
    %v150 = vld [vmem:[#allocation5 + $0x190] sm:$0xff]
    %v151 = vld [vmem:[#allocation5 + $0x198] sm:$0xff]
    %v152 = vld [vmem:[#allocation5 + $0x1a0] sm:$0xf]
    %v153 = vld [vmem:[#allocation5 + $0x1a4] sm:$0xff]
    %v154 = vld [vmem:[#allocation5 + $0x1ac] sm:$0xff]
    %v155 = vld [vmem:[#allocation5 + $0x1b4] sm:$0xf]
    %v156 = vld [vmem:[#allocation5 + $0x1b8] sm:$0xff]
    %v157 = vld [vmem:[#allocation5 + $0x1c0] sm:$0xff]
    %v158 = vld [vmem:[#allocation5 + $0x1c8] sm:$0xf]
    %v159 = vld [vmem:[#allocation5 + $0x1cc] sm:$0xff]
    %v160 = vld [vmem:[#allocation5 + $0x1d4] sm:$0xff]
    %v161 = vld [vmem:[#allocation5 + $0x1dc] sm:$0xf]
    %v162 = vld [vmem:[#allocation5 + $0x1e0] sm:$0xff]
    %v163 = vld [vmem:[#allocation5 + $0x1e8] sm:$0xff]
    %v164 = vld [vmem:[#allocation5 + $0x1f0] sm:$0xf]
    %v165 = vld [vmem:[#allocation5 + $0x1f4] sm:$0xff]
    %v166 = vld [vmem:[#allocation5 + $0x1fc] sm:$0xff]
    %v167 = vld [vmem:[#allocation5 + $0x204] sm:$0xf]
    %v168 = vld [vmem:[#allocation5 + $0x208] sm:$0xff]
    %v169 = vld [vmem:[#allocation5 + $0x210] sm:$0xff]
    %v170 = vld [vmem:[#allocation5 + $0x218] sm:$0xf]
    %v171 = vld [vmem:[#allocation5 + $0x21c] sm:$0xff]
    %v172 = vld [vmem:[#allocation5 + $0x224] sm:$0xff]
    %v173 = vld [vmem:[#allocation5 + $0x22c] sm:$0xf]
    %v174 = vld [vmem:[#allocation5 + $0x230] sm:$0xff]
    %v175 = vld [vmem:[#allocation5 + $0x238] sm:$0xff]
    %v176 = vld [vmem:[#allocation5 + $0x240] sm:$0xf]
    %v177 = vld [vmem:[#allocation5 + $0x244] sm:$0xff]
    %v178 = vld [vmem:[#allocation5 + $0x24c] sm:$0xff]
    %v179 = vld [vmem:[#allocation5 + $0x254] sm:$0xf]
    %v180 = vld [vmem:[#allocation5 + $0x258] sm:$0xff]
    %v181 = vld [vmem:[#allocation5 + $0x260] sm:$0xff]
    %v182 = vld [vmem:[#allocation5 + $0x268] sm:$0xf]
    %v183 = vld [vmem:[#allocation5 + $0x26c] sm:$0xff]
    %v184 = vld [vmem:[#allocation5 + $0x274] sm:$0xff]
    %v185 = vld [vmem:[#allocation5 + $0x27c] sm:$0xf]
    %v186 = vld [vmem:[#allocation5 + $0x280] sm:$0xff]
    %v187 = vld [vmem:[#allocation5 + $0x288] sm:$0xff]
    %v188 = vld [vmem:[#allocation5 + $0x290] sm:$0xf]
    %v189 = vld [vmem:[#allocation5 + $0x294] sm:$0xff]
    %v190 = vld [vmem:[#allocation5 + $0x29c] sm:$0xff]
    %v191 = vld [vmem:[#allocation5 + $0x2a4] sm:$0xf]
    %v192 = vld [vmem:[#allocation5 + $0x2a8] sm:$0xff]
    %v193 = vld [vmem:[#allocation5 + $0x2b0] sm:$0xff]
    %v194 = vld [vmem:[#allocation5 + $0x2b8] sm:$0xf]
    %v195 = vld [vmem:[#allocation5 + $0x2bc] sm:$0xff]
    %v196 = vld [vmem:[#allocation5 + $0x2c4] sm:$0xff]
    %v197 = vld [vmem:[#allocation5 + $0x2cc] sm:$0xf]
    %v198 = vld [vmem:[#allocation5 + $0x2d0] sm:$0xff]
    %v199 = vld [vmem:[#allocation5 + $0x2d8] sm:$0xff]
    %v200 = vld [vmem:[#allocation5 + $0x2e0] sm:$0xf]
    %v201 = vld [vmem:[#allocation5 + $0x2e4] sm:$0xff]
    %v202 = vld [vmem:[#allocation5 + $0x2ec] sm:$0xff]
    %v203 = vld [vmem:[#allocation5 + $0x2f4] sm:$0xf]
    %v204 = vld [vmem:[#allocation5 + $0x2f8] sm:$0xff]
    %v205 = vld [vmem:[#allocation5 + $0x300] sm:$0xff]
    %v206 = vld [vmem:[#allocation5 + $0x308] sm:$0xf]
    %v207 = vld [vmem:[#allocation5 + $0x30c] sm:$0xff]
    %v208 = vld [vmem:[#allocation5 + $0x314] sm:$0xff]
    %v209 = vld [vmem:[#allocation5 + $0x31c] sm:$0xf]
    %v210 = vld [vmem:[#allocation5 + $0x320] sm:$0xff]
    %v211 = vld [vmem:[#allocation5 + $0x328] sm:$0xff]
    %v212 = vld [vmem:[#allocation5 + $0x330] sm:$0xf]
    %v213 = vld [vmem:[#allocation5 + $0x334] sm:$0xff]
    %v214 = vld [vmem:[#allocation5 + $0x33c] sm:$0xff]
    %v215 = vld [vmem:[#allocation5 + $0x344] sm:$0xf]
    %v216 = vld [vmem:[#allocation5 + $0x348] sm:$0xff]
    %v217 = vld [vmem:[#allocation5 + $0x350] sm:$0xff]
    %v218 = vld [vmem:[#allocation5 + $0x358] sm:$0xf]
    %v219 = vld [vmem:[#allocation5 + $0x35c] sm:$0xff]
    %v220 = vld [vmem:[#allocation5 + $0x364] sm:$0xff]
    %v221 = vld [vmem:[#allocation5 + $0x36c] sm:$0xf]
    %v222 = vld [vmem:[#allocation5 + $0x370] sm:$0xff]
    %v223 = vld [vmem:[#allocation5 + $0x378] sm:$0xff]
    %v224 = vld [vmem:[#allocation5 + $0x380] sm:$0xf]
    %v225 = vld [vmem:[#allocation5 + $0x384] sm:$0xff]
    %v226 = vld [vmem:[#allocation5 + $0x38c] sm:$0xff]
    %v227 = vld [vmem:[#allocation5 + $0x394] sm:$0xf]
    %v228 = vld [vmem:[#allocation5 + $0x398] sm:$0xff]
    %v229 = vld [vmem:[#allocation5 + $0x3a0] sm:$0xff]
    %v230 = vld [vmem:[#allocation5 + $0x3a8] sm:$0xf]
    %v231 = vld [vmem:[#allocation5 + $0x3ac] sm:$0xff]
    %v232 = vld [vmem:[#allocation5 + $0x3b4] sm:$0xff]
    %v233 = vld [vmem:[#allocation5 + $0x3bc] sm:$0xf]
    %v234 = vld [vmem:[#allocation5 + $0x3c0] sm:$0xff]
    %v235 = vld [vmem:[#allocation5 + $0x3c8] sm:$0xff]
    %v236 = vld [vmem:[#allocation5 + $0x3d0] sm:$0xf]
    %v237 = vld [vmem:[#allocation5 + $0x3d4] sm:$0xff]
    %v238 = vld [vmem:[#allocation5 + $0x3dc] sm:$0xff]
    %v239 = vld [vmem:[#allocation5 + $0x3e4] sm:$0xf]
    %v240 = vld [vmem:[#allocation5 + $0x3e8] sm:$0xff]
    %v241 = vld [vmem:[#allocation5 + $0x3f0] sm:$0xff]
    %v242 = vld [vmem:[#allocation5 + $0x3f8] sm:$0xf]
    %v243 = vld [vmem:[#allocation5 + $0x3fc] sm:$0xff]
    %v244 = vld [vmem:[#allocation5 + $0x404] sm:$0xff]
    %v245 = vld [vmem:[#allocation5 + $0x40c] sm:$0xf]
    %v246 = vld [vmem:[#allocation5 + $0x410] sm:$0xff]
    %v247 = vld [vmem:[#allocation5 + $0x418] sm:$0xff]
    %v248 = vld [vmem:[#allocation5 + $0x420] sm:$0xf]
    %v249 = vld [vmem:[#allocation5 + $0x424] sm:$0xff]
    %v250 = vld [vmem:[#allocation5 + $0x42c] sm:$0xff]
    %v251 = vld [vmem:[#allocation5 + $0x434] sm:$0xf]
    %v252 = vld [vmem:[#allocation5 + $0x438] sm:$0xff]
    %v253 = vld [vmem:[#allocation5 + $0x440] sm:$0xff]
    %v254 = vld [vmem:[#allocation5 + $0x448] sm:$0xf]
    %v255 = vld [vmem:[#allocation5 + $0x44c] sm:$0xff]
    %v256 = vld [vmem:[#allocation5 + $0x454] sm:$0xff]
    %v257 = vld [vmem:[#allocation5 + $0x45c] sm:$0xf]
    %v258 = vld [vmem:[#allocation5 + $0x460] sm:$0xff]
    %v259 = vld [vmem:[#allocation5 + $0x468] sm:$0xff]
    %v260 = vld [vmem:[#allocation5 + $0x470] sm:$0xf]
    %v261 = vld [vmem:[#allocation5 + $0x474] sm:$0xff]
    %v262 = vld [vmem:[#allocation5 + $0x47c] sm:$0xff]
    %v263 = vld [vmem:[#allocation5 + $0x484] sm:$0xf]
    %v264 = vld [vmem:[#allocation5 + $0x488] sm:$0xff]
    %v265 = vld [vmem:[#allocation5 + $0x490] sm:$0xff]
    %v266 = vld [vmem:[#allocation5 + $0x498] sm:$0xf]
    %v267 = vld [vmem:[#allocation5 + $0x49c] sm:$0xff]
    %v268 = vld [vmem:[#allocation5 + $0x4a4] sm:$0xff]
    %v269 = vld [vmem:[#allocation5 + $0x4ac] sm:$0xf]
    %v270 = vld [vmem:[#allocation5 + $0x4b0] sm:$0xff]
    %v271 = vld [vmem:[#allocation5 + $0x4b8] sm:$0xff]
    %v272 = vld [vmem:[#allocation5 + $0x4c0] sm:$0xf]
    %v273 = vld [vmem:[#allocation5 + $0x4c4] sm:$0xff]
    %v274 = vld [vmem:[#allocation5 + $0x4cc] sm:$0xff]
    %v275 = vld [vmem:[#allocation5 + $0x4d4] sm:$0xf]
    %v276 = vld [vmem:[#allocation5 + $0x4d8] sm:$0xff]
    %v277 = vld [vmem:[#allocation5 + $0x4e0] sm:$0xff]
    %v278 = vld [vmem:[#allocation5 + $0x4e8] sm:$0xf]
    %v279 = vld [vmem:[#allocation5 + $0x4ec] sm:$0xff]
    %v280 = vld [vmem:[#allocation5 + $0x4f4] sm:$0xff]
    %v281 = vld [vmem:[#allocation5 + $0x4fc] sm:$0xf]
    %v282 = vld [vmem:[#allocation5 + $0x500] sm:$0xff]
    %v283 = vld [vmem:[#allocation5 + $0x508] sm:$0xff]
    %v284 = vld [vmem:[#allocation5 + $0x510] sm:$0xf]
    %v285 = vld [vmem:[#allocation5 + $0x514] sm:$0xff]
    %v286 = vld [vmem:[#allocation5 + $0x51c] sm:$0xff]
    %v287 = vld [vmem:[#allocation5 + $0x524] sm:$0xf]
    %v288 = vld [vmem:[#allocation5 + $0x528] sm:$0xff]
    %v289 = vld [vmem:[#allocation5 + $0x530] sm:$0xff]
    %v290 = vld [vmem:[#allocation5 + $0x538] sm:$0xf]
    %v291 = vld [vmem:[#allocation5 + $0x53c] sm:$0xff]
    %v292 = vld [vmem:[#allocation5 + $0x544] sm:$0xff]
    %v293 = vld [vmem:[#allocation5 + $0x54c] sm:$0xf]
    %v294 = vld [vmem:[#allocation5 + $0x550] sm:$0xff]
    %v295 = vld [vmem:[#allocation5 + $0x558] sm:$0xff]
    %v296 = vld [vmem:[#allocation5 + $0x560] sm:$0xf]
    %v297 = vld [vmem:[#allocation5 + $0x564] sm:$0xff]
    %v298 = vld [vmem:[#allocation5 + $0x56c] sm:$0xff]
    %v299 = vld [vmem:[#allocation5 + $0x574] sm:$0xf]
    %v300 = vld [vmem:[#allocation5 + $0x578] sm:$0xff]
    %v301 = vld [vmem:[#allocation5 + $0x580] sm:$0xff]
    %v302 = vld [vmem:[#allocation5 + $0x588] sm:$0xf]
    %v303 = vld [vmem:[#allocation5 + $0x58c] sm:$0xff]
    %v304 = vld [vmem:[#allocation5 + $0x594] sm:$0xff]
    %v305 = vld [vmem:[#allocation5 + $0x59c] sm:$0xf]
    %v306 = vld [vmem:[#allocation5 + $0x5a0] sm:$0xff]
    %v307 = vld [vmem:[#allocation5 + $0x5a8] sm:$0xff]
    %v308 = vld [vmem:[#allocation5 + $0x5b0] sm:$0xf]
    %v309 = vld [vmem:[#allocation5 + $0x5b4] sm:$0xff]
    %v310 = vld [vmem:[#allocation5 + $0x5bc] sm:$0xff]
    %v311 = vld [vmem:[#allocation5 + $0x5c4] sm:$0xf]
    %v312 = vld [vmem:[#allocation5 + $0x5c8] sm:$0xff]
    %v313 = vld [vmem:[#allocation5 + $0x5d0] sm:$0xff]
    %v314 = vld [vmem:[#allocation5 + $0x5d8] sm:$0xf]
    %v315 = vld [vmem:[#allocation5 + $0x5dc] sm:$0xff]
    %v316 = vld [vmem:[#allocation5 + $0x5e4] sm:$0xff]
    %v317 = vld [vmem:[#allocation5 + $0x5ec] sm:$0xf]
    %v318 = vld [vmem:[#allocation5 + $0x5f0] sm:$0xff]
    %v319 = vld [vmem:[#allocation5 + $0x5f8] sm:$0xff]
    %v320 = vld [vmem:[#allocation5 + $0x600] sm:$0xf]
    %v321 = vld [vmem:[#allocation5 + $0x604] sm:$0xff]
    %v322 = vld [vmem:[#allocation5 + $0x60c] sm:$0xff]
    %v323 = vld [vmem:[#allocation5 + $0x614] sm:$0xf]
    %v324 = vld [vmem:[#allocation5 + $0x618] sm:$0xff]
    %v325 = vld [vmem:[#allocation5 + $0x620] sm:$0xff]
    %v326 = vld [vmem:[#allocation5 + $0x628] sm:$0xf]
    %v327 = vld [vmem:[#allocation5 + $0x62c] sm:$0xff]
    %v328 = vld [vmem:[#allocation5 + $0x634] sm:$0xff]
    %v329 = vld [vmem:[#allocation5 + $0x63c] sm:$0xf]
    %v330 = vld [vmem:[#allocation5 + $0x640] sm:$0xff]
    %v331 = vld [vmem:[#allocation5 + $0x648] sm:$0xff]
    %v332 = vld [vmem:[#allocation5 + $0x650] sm:$0xf]
    %v333 = vld [vmem:[#allocation5 + $0x654] sm:$0xff]
    %v334 = vld [vmem:[#allocation5 + $0x65c] sm:$0xff]
    %v335 = vld [vmem:[#allocation5 + $0x664] sm:$0xf]
    %v336 = vld [vmem:[#allocation5 + $0x668] sm:$0xff]
    %v337 = vld [vmem:[#allocation5 + $0x670] sm:$0xff]
    %v338 = vld [vmem:[#allocation5 + $0x678] sm:$0xf]
    %v339 = vld [vmem:[#allocation5 + $0x67c] sm:$0xff]
    %v340 = vld [vmem:[#allocation5 + $0x684] sm:$0xff]
    %v341 = vld [vmem:[#allocation5 + $0x68c] sm:$0xf]
    %v342 = vld [vmem:[#allocation5 + $0x690] sm:$0xff]
    %v343 = vld [vmem:[#allocation5 + $0x698] sm:$0xff]
    %v344 = vld [vmem:[#allocation5 + $0x6a0] sm:$0xf]
    %v345 = vld [vmem:[#allocation5 + $0x6a4] sm:$0xff]
    %v346 = vld [vmem:[#allocation5 + $0x6ac] sm:$0xff]
    %v347 = vld [vmem:[#allocation5 + $0x6b4] sm:$0xf]
    %v348 = vld [vmem:[#allocation5 + $0x6b8] sm:$0xff]
    %v349 = vld [vmem:[#allocation5 + $0x6c0] sm:$0xff]
    %v350 = vld [vmem:[#allocation5 + $0x6c8] sm:$0xf]
    %v351 = vld [vmem:[#allocation5 + $0x6cc] sm:$0xff]
    %v352 = vld [vmem:[#allocation5 + $0x6d4] sm:$0xff]
    %v353 = vld [vmem:[#allocation5 + $0x6dc] sm:$0xf]
    %v354 = vld [vmem:[#allocation5 + $0x6e0] sm:$0xff]
    %v355 = vld [vmem:[#allocation5 + $0x6e8] sm:$0xff]
    %v356 = vld [vmem:[#allocation5 + $0x6f0] sm:$0xf]
    %v357 = vld [vmem:[#allocation5 + $0x6f4] sm:$0xff]
    %v358 = vld [vmem:[#allocation5 + $0x6fc] sm:$0xff]
    %v359 = vld [vmem:[#allocation5 + $0x704] sm:$0xf]
    %v360 = vld [vmem:[#allocation5 + $0x708] sm:$0xff]
    %v361 = vld [vmem:[#allocation5 + $0x710] sm:$0xff]
    %v362 = vld [vmem:[#allocation5 + $0x718] sm:$0xf]
    %v363 = vld [vmem:[#allocation5 + $0x71c] sm:$0xff]
    %v364 = vld [vmem:[#allocation5 + $0x724] sm:$0xff]
    %v365 = vld [vmem:[#allocation5 + $0x72c] sm:$0xf]
    %v366 = vld [vmem:[#allocation5 + $0x730] sm:$0xff]
    %v367 = vld [vmem:[#allocation5 + $0x738] sm:$0xff]
    %v368 = vld [vmem:[#allocation5 + $0x740] sm:$0xf]
    %v369 = vld [vmem:[#allocation5 + $0x744] sm:$0xff]
    %v370 = vld [vmem:[#allocation5 + $0x74c] sm:$0xff]
    %v371 = vld [vmem:[#allocation5 + $0x754] sm:$0xf]
    %v372 = vld [vmem:[#allocation5 + $0x758] sm:$0xff]
    %v373 = vld [vmem:[#allocation5 + $0x760] sm:$0xff]
    %v374 = vld [vmem:[#allocation5 + $0x768] sm:$0xf]
    %v375 = vld [vmem:[#allocation5 + $0x76c] sm:$0xff]
    %v376 = vld [vmem:[#allocation5 + $0x774] sm:$0xff]
    %v377 = vld [vmem:[#allocation5 + $0x77c] sm:$0xf]
    %v378 = vld [vmem:[#allocation5 + $0x780] sm:$0xff]
    %v379 = vld [vmem:[#allocation5 + $0x788] sm:$0xff]
    %v380 = vld [vmem:[#allocation5 + $0x790] sm:$0xf]
    %v381 = vld [vmem:[#allocation5 + $0x794] sm:$0xff]
    %v382 = vld [vmem:[#allocation5 + $0x79c] sm:$0xff]
    %v383 = vld [vmem:[#allocation5 + $0x7a4] sm:$0xf]
    %v384 = vld [vmem:[#allocation7] sm:$0x1f]
    %v386 = vlaneseq
    %v387 = vshrl.u32 %v386, 7
    %v388 = vsub.s32 0, %v387
    %v389 = vrot.slane %v384, %v388
    %v390 = vlaneseq
    %v391 = vshrl.u32 %v390, 7
    %v392 = vsub.s32 1, %v391
    %v393 = vrot.slane %v384, %v392
    %v394 = vlaneseq
    %v395 = vshrl.u32 %v394, 7
    %v396 = vsub.s32 2, %v395
    %v397 = vrot.slane %v384, %v396
    %v398 = vlaneseq
    %v399 = vshrl.u32 %v398, 7
    %v400 = vsub.s32 3, %v399
    %v401 = vrot.slane %v384, %v400
    %v402 = vlaneseq
    %v403 = vshrl.u32 %v402, 7
    %v404 = vsub.s32 4, %v403
    %v405 = vrot.slane %v384, %v404
    %v415 = vunpack.c.l.b16 %v86
    %v416 = vunpack.c.h.b16 %v86
    %v417 = vunpack.c.l.b16 %v87
    %v418 = vunpack.c.h.b16 %v87
    %v419 = vunpack.c.l.b16 %v88
    %v420 = vunpack.c.h.b16 %v88
    %v421 = vunpack.c.l.b16 %v89
    %v422 = vpack.c.b16 %v415, %v415
    %v423 = vpack.c.b16 %v416, %v416
    %v424 = vpack.c.b16 %v417, %v417
    %v425 = vpack.c.b16 %v418, %v418
    %v426 = vpack.c.b16 %v419, %v419
    %v427 = vpack.c.b16 %v420, %v420
    %v428 = vpack.c.b16 %v421, %v421
    %v729 = vunpack.c.l.b16 %v90
    %v730 = vunpack.c.h.b16 %v90
    %v731 = vunpack.c.l.b16 %v91
    %v732 = vunpack.c.h.b16 %v91
    %v733 = vunpack.c.l.b16 %v92
    %v734 = vunpack.c.l.b16 %v93
    %v735 = vunpack.c.h.b16 %v93
    %v736 = vunpack.c.l.b16 %v94
    %v737 = vunpack.c.h.b16 %v94
    %v738 = vunpack.c.l.b16 %v95
    %v739 = vunpack.c.l.b16 %v96
    %v740 = vunpack.c.h.b16 %v96
    %v741 = vunpack.c.l.b16 %v97
    %v742 = vunpack.c.h.b16 %v97
    %v743 = vunpack.c.l.b16 %v98
    %v744 = vunpack.c.l.b16 %v99
    %v745 = vunpack.c.h.b16 %v99
    %v746 = vunpack.c.l.b16 %v100
    %v747 = vunpack.c.h.b16 %v100
    %v748 = vunpack.c.l.b16 %v101
    %v749 = vunpack.c.l.b16 %v102
    %v750 = vunpack.c.h.b16 %v102
    %v751 = vunpack.c.l.b16 %v103
    %v752 = vunpack.c.h.b16 %v103
    %v753 = vunpack.c.l.b16 %v104
    %v754 = vunpack.c.l.b16 %v105
    %v755 = vunpack.c.h.b16 %v105
    %v756 = vunpack.c.l.b16 %v106
    %v757 = vunpack.c.h.b16 %v106
    %v758 = vunpack.c.l.b16 %v107
    %v759 = vunpack.c.l.b16 %v108
    %v760 = vunpack.c.h.b16 %v108
    %v761 = vunpack.c.l.b16 %v109
    %v762 = vunpack.c.h.b16 %v109
    %v763 = vunpack.c.l.b16 %v110
    %v764 = vunpack.c.l.b16 %v111
    %v765 = vunpack.c.h.b16 %v111
    %v766 = vunpack.c.l.b16 %v112
    %v767 = vunpack.c.h.b16 %v112
    %v768 = vunpack.c.l.b16 %v113
    %v769 = vunpack.c.l.b16 %v114
    %v770 = vunpack.c.h.b16 %v114
    %v771 = vunpack.c.l.b16 %v115
    %v772 = vunpack.c.h.b16 %v115
    %v773 = vunpack.c.l.b16 %v116
    %v774 = vunpack.c.l.b16 %v117
    %v775 = vunpack.c.h.b16 %v117
    %v776 = vunpack.c.l.b16 %v118
    %v777 = vunpack.c.h.b16 %v118
    %v778 = vunpack.c.l.b16 %v119
    %v779 = vunpack.c.l.b16 %v120
    %v780 = vunpack.c.h.b16 %v120
    %v781 = vunpack.c.l.b16 %v121
    %v782 = vunpack.c.h.b16 %v121
    %v783 = vunpack.c.l.b16 %v122
    %v784 = vunpack.c.l.b16 %v123
    %v785 = vunpack.c.h.b16 %v123
    %v786 = vunpack.c.l.b16 %v124
    %v787 = vunpack.c.h.b16 %v124
    %v788 = vunpack.c.l.b16 %v125
    %v789 = vunpack.c.l.b16 %v126
    %v790 = vunpack.c.h.b16 %v126
    %v791 = vunpack.c.l.b16 %v127
    %v792 = vunpack.c.h.b16 %v127
    %v793 = vunpack.c.l.b16 %v128
    %v794 = vunpack.c.l.b16 %v129
    %v795 = vunpack.c.h.b16 %v129
    %v796 = vunpack.c.l.b16 %v130
    %v797 = vunpack.c.h.b16 %v130
    %v798 = vunpack.c.l.b16 %v131
    %v799 = vunpack.c.l.b16 %v132
    %v800 = vunpack.c.h.b16 %v132
    %v801 = vunpack.c.l.b16 %v133
    %v802 = vunpack.c.h.b16 %v133
    %v803 = vunpack.c.l.b16 %v134
    %v804 = vunpack.c.l.b16 %v135
    %v805 = vunpack.c.h.b16 %v135
    %v806 = vunpack.c.l.b16 %v136
    %v807 = vunpack.c.h.b16 %v136
    %v808 = vunpack.c.l.b16 %v137
    %v809 = vunpack.c.l.b16 %v138
    %v810 = vunpack.c.h.b16 %v138
    %v811 = vunpack.c.l.b16 %v139
    %v812 = vunpack.c.h.b16 %v139
    %v813 = vunpack.c.l.b16 %v140
    %v814 = vunpack.c.l.b16 %v141
    %v815 = vunpack.c.h.b16 %v141
    %v816 = vunpack.c.l.b16 %v142
    %v817 = vunpack.c.h.b16 %v142
    %v818 = vunpack.c.l.b16 %v143
    %v819 = vunpack.c.l.b16 %v144
    %v820 = vunpack.c.h.b16 %v144
    %v821 = vunpack.c.l.b16 %v145
    %v822 = vunpack.c.h.b16 %v145
    %v823 = vunpack.c.l.b16 %v146
    %v824 = vunpack.c.l.b16 %v147
    %v825 = vunpack.c.h.b16 %v147
    %v826 = vunpack.c.l.b16 %v148
    %v827 = vunpack.c.h.b16 %v148
    %v828 = vunpack.c.l.b16 %v149
    %v829 = vunpack.c.l.b16 %v150
    %v830 = vunpack.c.h.b16 %v150
    %v831 = vunpack.c.l.b16 %v151
    %v832 = vunpack.c.h.b16 %v151
    %v833 = vunpack.c.l.b16 %v152
    %v834 = vunpack.c.l.b16 %v153
    %v835 = vunpack.c.h.b16 %v153
    %v836 = vunpack.c.l.b16 %v154
    %v837 = vunpack.c.h.b16 %v154
    %v838 = vunpack.c.l.b16 %v155
    %v839 = vunpack.c.l.b16 %v156
    %v840 = vunpack.c.h.b16 %v156
    %v841 = vunpack.c.l.b16 %v157
    %v842 = vunpack.c.h.b16 %v157
    %v843 = vunpack.c.l.b16 %v158
    %v844 = vunpack.c.l.b16 %v159
    %v845 = vunpack.c.h.b16 %v159
    %v846 = vunpack.c.l.b16 %v160
    %v847 = vunpack.c.h.b16 %v160
    %v848 = vunpack.c.l.b16 %v161
    %v849 = vunpack.c.l.b16 %v162
    %v850 = vunpack.c.h.b16 %v162
    %v851 = vunpack.c.l.b16 %v163
    %v852 = vunpack.c.h.b16 %v163
    %v853 = vunpack.c.l.b16 %v164
    %v854 = vunpack.c.l.b16 %v165
    %v855 = vunpack.c.h.b16 %v165
    %v856 = vunpack.c.l.b16 %v166
    %v857 = vunpack.c.h.b16 %v166
    %v858 = vunpack.c.l.b16 %v167
    %v859 = vunpack.c.l.b16 %v168
    %v860 = vunpack.c.h.b16 %v168
    %v861 = vunpack.c.l.b16 %v169
    %v862 = vunpack.c.h.b16 %v169
    %v863 = vunpack.c.l.b16 %v170
    %v864 = vunpack.c.l.b16 %v171
    %v865 = vunpack.c.h.b16 %v171
    %v866 = vunpack.c.l.b16 %v172
    %v867 = vunpack.c.h.b16 %v172
    %v868 = vunpack.c.l.b16 %v173
    %v869 = vunpack.c.l.b16 %v174
    %v870 = vunpack.c.h.b16 %v174
    %v871 = vunpack.c.l.b16 %v175
    %v872 = vunpack.c.h.b16 %v175
    %v873 = vunpack.c.l.b16 %v176
    %v874 = vunpack.c.l.b16 %v177
    %v875 = vunpack.c.h.b16 %v177
    %v876 = vunpack.c.l.b16 %v178
    %v877 = vunpack.c.h.b16 %v178
    %v878 = vunpack.c.l.b16 %v179
    %v879 = vunpack.c.l.b16 %v180
    %v880 = vunpack.c.h.b16 %v180
    %v881 = vunpack.c.l.b16 %v181
    %v882 = vunpack.c.h.b16 %v181
    %v883 = vunpack.c.l.b16 %v182
    %v884 = vunpack.c.l.b16 %v183
    %v885 = vunpack.c.h.b16 %v183
    %v886 = vunpack.c.l.b16 %v184
    %v887 = vunpack.c.h.b16 %v184
    %v888 = vunpack.c.l.b16 %v185
    %v889 = vunpack.c.l.b16 %v186
    %v890 = vunpack.c.h.b16 %v186
    %v891 = vunpack.c.l.b16 %v187
    %v892 = vunpack.c.h.b16 %v187
    %v893 = vunpack.c.l.b16 %v188
    %v894 = vunpack.c.l.b16 %v189
    %v895 = vunpack.c.h.b16 %v189
    %v896 = vunpack.c.l.b16 %v190
    %v897 = vunpack.c.h.b16 %v190
    %v898 = vunpack.c.l.b16 %v191
    %v899 = vunpack.c.l.b16 %v192
    %v900 = vunpack.c.h.b16 %v192
    %v901 = vunpack.c.l.b16 %v193
    %v902 = vunpack.c.h.b16 %v193
    %v903 = vunpack.c.l.b16 %v194
    %v904 = vunpack.c.l.b16 %v195
    %v905 = vunpack.c.h.b16 %v195
    %v906 = vunpack.c.l.b16 %v196
    %v907 = vunpack.c.h.b16 %v196
    %v908 = vunpack.c.l.b16 %v197
    %v909 = vunpack.c.l.b16 %v198
    %v910 = vunpack.c.h.b16 %v198
    %v911 = vunpack.c.l.b16 %v199
    %v912 = vunpack.c.h.b16 %v199
    %v913 = vunpack.c.l.b16 %v200
    %v914 = vunpack.c.l.b16 %v201
    %v915 = vunpack.c.h.b16 %v201
    %v916 = vunpack.c.l.b16 %v202
    %v917 = vunpack.c.h.b16 %v202
    %v918 = vunpack.c.l.b16 %v203
    %v919 = vunpack.c.l.b16 %v204
    %v920 = vunpack.c.h.b16 %v204
    %v921 = vunpack.c.l.b16 %v205
    %v922 = vunpack.c.h.b16 %v205
    %v923 = vunpack.c.l.b16 %v206
    %v924 = vunpack.c.l.b16 %v207
    %v925 = vunpack.c.h.b16 %v207
    %v926 = vunpack.c.l.b16 %v208
    %v927 = vunpack.c.h.b16 %v208
    %v928 = vunpack.c.l.b16 %v209
    %v929 = vunpack.c.l.b16 %v210
    %v930 = vunpack.c.h.b16 %v210
    %v931 = vunpack.c.l.b16 %v211
    %v932 = vunpack.c.h.b16 %v211
    %v933 = vunpack.c.l.b16 %v212
    %v934 = vunpack.c.l.b16 %v213
    %v935 = vunpack.c.h.b16 %v213
    %v936 = vunpack.c.l.b16 %v214
    %v937 = vunpack.c.h.b16 %v214
    %v938 = vunpack.c.l.b16 %v215
    %v939 = vunpack.c.l.b16 %v216
    %v940 = vunpack.c.h.b16 %v216
    %v941 = vunpack.c.l.b16 %v217
    %v942 = vunpack.c.h.b16 %v217
    %v943 = vunpack.c.l.b16 %v218
    %v944 = vunpack.c.l.b16 %v219
    %v945 = vunpack.c.h.b16 %v219
    %v946 = vunpack.c.l.b16 %v220
    %v947 = vunpack.c.h.b16 %v220
    %v948 = vunpack.c.l.b16 %v221
    %v949 = vunpack.c.l.b16 %v222
    %v950 = vunpack.c.h.b16 %v222
    %v951 = vunpack.c.l.b16 %v223
    %v952 = vunpack.c.h.b16 %v223
    %v953 = vunpack.c.l.b16 %v224
    %v954 = vunpack.c.l.b16 %v225
    %v955 = vunpack.c.h.b16 %v225
    %v956 = vunpack.c.l.b16 %v226
    %v957 = vunpack.c.h.b16 %v226
    %v958 = vunpack.c.l.b16 %v227
    %v959 = vunpack.c.l.b16 %v228
    %v960 = vunpack.c.h.b16 %v228
    %v961 = vunpack.c.l.b16 %v229
    %v962 = vunpack.c.h.b16 %v229
    %v963 = vunpack.c.l.b16 %v230
    %v964 = vunpack.c.l.b16 %v231
    %v965 = vunpack.c.h.b16 %v231
    %v966 = vunpack.c.l.b16 %v232
    %v967 = vunpack.c.h.b16 %v232
    %v968 = vunpack.c.l.b16 %v233
    %v969 = vunpack.c.l.b16 %v234
    %v970 = vunpack.c.h.b16 %v234
    %v971 = vunpack.c.l.b16 %v235
    %v972 = vunpack.c.h.b16 %v235
    %v973 = vunpack.c.l.b16 %v236
    %v974 = vunpack.c.l.b16 %v237
    %v975 = vunpack.c.h.b16 %v237
    %v976 = vunpack.c.l.b16 %v238
    %v977 = vunpack.c.h.b16 %v238
    %v978 = vunpack.c.l.b16 %v239
    %v979 = vunpack.c.l.b16 %v240
    %v980 = vunpack.c.h.b16 %v240
    %v981 = vunpack.c.l.b16 %v241
    %v982 = vunpack.c.h.b16 %v241
    %v983 = vunpack.c.l.b16 %v242
    %v984 = vunpack.c.l.b16 %v243
    %v985 = vunpack.c.h.b16 %v243
    %v986 = vunpack.c.l.b16 %v244
    %v987 = vunpack.c.h.b16 %v244
    %v988 = vunpack.c.l.b16 %v245
    %v989 = vunpack.c.l.b16 %v246
    %v990 = vunpack.c.h.b16 %v246
    %v991 = vunpack.c.l.b16 %v247
    %v992 = vunpack.c.h.b16 %v247
    %v993 = vunpack.c.l.b16 %v248
    %v994 = vunpack.c.l.b16 %v249
    %v995 = vunpack.c.h.b16 %v249
    %v996 = vunpack.c.l.b16 %v250
    %v997 = vunpack.c.h.b16 %v250
    %v998 = vunpack.c.l.b16 %v251
    %v999 = vunpack.c.l.b16 %v252
    %v1000 = vunpack.c.h.b16 %v252
    %v1001 = vunpack.c.l.b16 %v253
    %v1002 = vunpack.c.h.b16 %v253
    %v1003 = vunpack.c.l.b16 %v254
    %v1004 = vunpack.c.l.b16 %v255
    %v1005 = vunpack.c.h.b16 %v255
    %v1006 = vunpack.c.l.b16 %v256
    %v1007 = vunpack.c.h.b16 %v256
    %v1008 = vunpack.c.l.b16 %v257
    %v1009 = vunpack.c.l.b16 %v258
    %v1010 = vunpack.c.h.b16 %v258
    %v1011 = vunpack.c.l.b16 %v259
    %v1012 = vunpack.c.h.b16 %v259
    %v1013 = vunpack.c.l.b16 %v260
    %v1014 = vunpack.c.l.b16 %v261
    %v1015 = vunpack.c.h.b16 %v261
    %v1016 = vunpack.c.l.b16 %v262
    %v1017 = vunpack.c.h.b16 %v262
    %v1018 = vunpack.c.l.b16 %v263
    %v1019 = vunpack.c.l.b16 %v264
    %v1020 = vunpack.c.h.b16 %v264
    %v1021 = vunpack.c.l.b16 %v265
    %v1022 = vunpack.c.h.b16 %v265
    %v1023 = vunpack.c.l.b16 %v266
    %v1024 = vunpack.c.l.b16 %v267
    %v1025 = vunpack.c.h.b16 %v267
    %v1026 = vunpack.c.l.b16 %v268
    %v1027 = vunpack.c.h.b16 %v268
    %v1028 = vunpack.c.l.b16 %v269
    %v1029 = vunpack.c.l.b16 %v270
    %v1030 = vunpack.c.h.b16 %v270
    %v1031 = vunpack.c.l.b16 %v271
    %v1032 = vunpack.c.h.b16 %v271
    %v1033 = vunpack.c.l.b16 %v272
    %v1034 = vunpack.c.l.b16 %v273
    %v1035 = vunpack.c.h.b16 %v273
    %v1036 = vunpack.c.l.b16 %v274
    %v1037 = vunpack.c.h.b16 %v274
    %v1038 = vunpack.c.l.b16 %v275
    %v1039 = vunpack.c.l.b16 %v276
    %v1040 = vunpack.c.h.b16 %v276
    %v1041 = vunpack.c.l.b16 %v277
    %v1042 = vunpack.c.h.b16 %v277
    %v1043 = vunpack.c.l.b16 %v278
    %v1044 = vunpack.c.l.b16 %v279
    %v1045 = vunpack.c.h.b16 %v279
    %v1046 = vunpack.c.l.b16 %v280
    %v1047 = vunpack.c.h.b16 %v280
    %v1048 = vunpack.c.l.b16 %v281
    %v1049 = vunpack.c.l.b16 %v282
    %v1050 = vunpack.c.h.b16 %v282
    %v1051 = vunpack.c.l.b16 %v283
    %v1052 = vunpack.c.h.b16 %v283
    %v1053 = vunpack.c.l.b16 %v284
    %v1054 = vunpack.c.l.b16 %v285
    %v1055 = vunpack.c.h.b16 %v285
    %v1056 = vunpack.c.l.b16 %v286
    %v1057 = vunpack.c.h.b16 %v286
    %v1058 = vunpack.c.l.b16 %v287
    %v1059 = vunpack.c.l.b16 %v288
    %v1060 = vunpack.c.h.b16 %v288
    %v1061 = vunpack.c.l.b16 %v289
    %v1062 = vunpack.c.h.b16 %v289
    %v1063 = vunpack.c.l.b16 %v290
    %v1064 = vunpack.c.l.b16 %v291
    %v1065 = vunpack.c.h.b16 %v291
    %v1066 = vunpack.c.l.b16 %v292
    %v1067 = vunpack.c.h.b16 %v292
    %v1068 = vunpack.c.l.b16 %v293
    %v1069 = vunpack.c.l.b16 %v294
    %v1070 = vunpack.c.h.b16 %v294
    %v1071 = vunpack.c.l.b16 %v295
    %v1072 = vunpack.c.h.b16 %v295
    %v1073 = vunpack.c.l.b16 %v296
    %v1074 = vunpack.c.l.b16 %v297
    %v1075 = vunpack.c.h.b16 %v297
    %v1076 = vunpack.c.l.b16 %v298
    %v1077 = vunpack.c.h.b16 %v298
    %v1078 = vunpack.c.l.b16 %v299
    %v1079 = vunpack.c.l.b16 %v300
    %v1080 = vunpack.c.h.b16 %v300
    %v1081 = vunpack.c.l.b16 %v301
    %v1082 = vunpack.c.h.b16 %v301
    %v1083 = vunpack.c.l.b16 %v302
    %v1084 = vunpack.c.l.b16 %v303
    %v1085 = vunpack.c.h.b16 %v303
    %v1086 = vunpack.c.l.b16 %v304
    %v1087 = vunpack.c.h.b16 %v304
    %v1088 = vunpack.c.l.b16 %v305
    %v1089 = vunpack.c.l.b16 %v306
    %v1090 = vunpack.c.h.b16 %v306
    %v1091 = vunpack.c.l.b16 %v307
    %v1092 = vunpack.c.h.b16 %v307
    %v1093 = vunpack.c.l.b16 %v308
    %v1094 = vunpack.c.l.b16 %v309
    %v1095 = vunpack.c.h.b16 %v309
    %v1096 = vunpack.c.l.b16 %v310
    %v1097 = vunpack.c.h.b16 %v310
    %v1098 = vunpack.c.l.b16 %v311
    %v1099 = vunpack.c.l.b16 %v312
    %v1100 = vunpack.c.h.b16 %v312
    %v1101 = vunpack.c.l.b16 %v313
    %v1102 = vunpack.c.h.b16 %v313
    %v1103 = vunpack.c.l.b16 %v314
    %v1104 = vunpack.c.l.b16 %v315
    %v1105 = vunpack.c.h.b16 %v315
    %v1106 = vunpack.c.l.b16 %v316
    %v1107 = vunpack.c.h.b16 %v316
    %v1108 = vunpack.c.l.b16 %v317
    %v1109 = vunpack.c.l.b16 %v318
    %v1110 = vunpack.c.h.b16 %v318
    %v1111 = vunpack.c.l.b16 %v319
    %v1112 = vunpack.c.h.b16 %v319
    %v1113 = vunpack.c.l.b16 %v320
    %v1114 = vunpack.c.l.b16 %v321
    %v1115 = vunpack.c.h.b16 %v321
    %v1116 = vunpack.c.l.b16 %v322
    %v1117 = vunpack.c.h.b16 %v322
    %v1118 = vunpack.c.l.b16 %v323
    %v1119 = vunpack.c.l.b16 %v324
    %v1120 = vunpack.c.h.b16 %v324
    %v1121 = vunpack.c.l.b16 %v325
    %v1122 = vunpack.c.h.b16 %v325
    %v1123 = vunpack.c.l.b16 %v326
    %v1124 = vunpack.c.l.b16 %v327
    %v1125 = vunpack.c.h.b16 %v327
    %v1126 = vunpack.c.l.b16 %v328
    %v1127 = vunpack.c.h.b16 %v328
    %v1128 = vunpack.c.l.b16 %v329
    %v1129 = vunpack.c.l.b16 %v330
    %v1130 = vunpack.c.h.b16 %v330
    %v1131 = vunpack.c.l.b16 %v331
    %v1132 = vunpack.c.h.b16 %v331
    %v1133 = vunpack.c.l.b16 %v332
    %v1134 = vunpack.c.l.b16 %v333
    %v1135 = vunpack.c.h.b16 %v333
    %v1136 = vunpack.c.l.b16 %v334
    %v1137 = vunpack.c.h.b16 %v334
    %v1138 = vunpack.c.l.b16 %v335
    %v1139 = vunpack.c.l.b16 %v336
    %v1140 = vunpack.c.h.b16 %v336
    %v1141 = vunpack.c.l.b16 %v337
    %v1142 = vunpack.c.h.b16 %v337
    %v1143 = vunpack.c.l.b16 %v338
    %v1144 = vunpack.c.l.b16 %v339
    %v1145 = vunpack.c.h.b16 %v339
    %v1146 = vunpack.c.l.b16 %v340
    %v1147 = vunpack.c.h.b16 %v340
    %v1148 = vunpack.c.l.b16 %v341
    %v1149 = vunpack.c.l.b16 %v342
    %v1150 = vunpack.c.h.b16 %v342
    %v1151 = vunpack.c.l.b16 %v343
    %v1152 = vunpack.c.h.b16 %v343
    %v1153 = vunpack.c.l.b16 %v344
    %v1154 = vunpack.c.l.b16 %v345
    %v1155 = vunpack.c.h.b16 %v345
    %v1156 = vunpack.c.l.b16 %v346
    %v1157 = vunpack.c.h.b16 %v346
    %v1158 = vunpack.c.l.b16 %v347
    %v1159 = vunpack.c.l.b16 %v348
    %v1160 = vunpack.c.h.b16 %v348
    %v1161 = vunpack.c.l.b16 %v349
    %v1162 = vunpack.c.h.b16 %v349
    %v1163 = vunpack.c.l.b16 %v350
    %v1164 = vunpack.c.l.b16 %v351
    %v1165 = vunpack.c.h.b16 %v351
    %v1166 = vunpack.c.l.b16 %v352
    %v1167 = vunpack.c.h.b16 %v352
    %v1168 = vunpack.c.l.b16 %v353
    %v1169 = vunpack.c.l.b16 %v354
    %v1170 = vunpack.c.h.b16 %v354
    %v1171 = vunpack.c.l.b16 %v355
    %v1172 = vunpack.c.h.b16 %v355
    %v1173 = vunpack.c.l.b16 %v356
    %v1174 = vunpack.c.l.b16 %v357
    %v1175 = vunpack.c.h.b16 %v357
    %v1176 = vunpack.c.l.b16 %v358
    %v1177 = vunpack.c.h.b16 %v358
    %v1178 = vunpack.c.l.b16 %v359
    %v1179 = vunpack.c.l.b16 %v360
    %v1180 = vunpack.c.h.b16 %v360
    %v1181 = vunpack.c.l.b16 %v361
    %v1182 = vunpack.c.h.b16 %v361
    %v1183 = vunpack.c.l.b16 %v362
    %v1184 = vunpack.c.l.b16 %v363
    %v1185 = vunpack.c.h.b16 %v363
    %v1186 = vunpack.c.l.b16 %v364
    %v1187 = vunpack.c.h.b16 %v364
    %v1188 = vunpack.c.l.b16 %v365
    %v1189 = vunpack.c.l.b16 %v366
    %v1190 = vunpack.c.h.b16 %v366
    %v1191 = vunpack.c.l.b16 %v367
    %v1192 = vunpack.c.h.b16 %v367
    %v1193 = vunpack.c.l.b16 %v368
    %v1194 = vunpack.c.l.b16 %v369
    %v1195 = vunpack.c.h.b16 %v369
    %v1196 = vunpack.c.l.b16 %v370
    %v1197 = vunpack.c.h.b16 %v370
    %v1198 = vunpack.c.l.b16 %v371
    %v1199 = vunpack.c.l.b16 %v372
    %v1200 = vunpack.c.h.b16 %v372
    %v1201 = vunpack.c.l.b16 %v373
    %v1202 = vunpack.c.h.b16 %v373
    %v1203 = vunpack.c.l.b16 %v374
    %v1204 = vunpack.c.l.b16 %v375
    %v1205 = vunpack.c.h.b16 %v375
    %v1206 = vunpack.c.l.b16 %v376
    %v1207 = vunpack.c.h.b16 %v376
    %v1208 = vunpack.c.l.b16 %v377
    %v1209 = vunpack.c.l.b16 %v378
    %v1210 = vunpack.c.h.b16 %v378
    %v1211 = vunpack.c.l.b16 %v379
    %v1212 = vunpack.c.h.b16 %v379
    %v1213 = vunpack.c.l.b16 %v380
    %v1214 = vunpack.c.l.b16 %v381
    %v1215 = vunpack.c.h.b16 %v381
    %v1216 = vunpack.c.l.b16 %v382
    %v1217 = vunpack.c.h.b16 %v382
    %v1218 = vunpack.c.l.b16 %v383
    %v1219 = vpack.c.b16 %v734, %v729
    %v1220 = vpack.c.b16 %v735, %v730
    %v1221 = vpack.c.b16 %v736, %v731
    %v1222 = vpack.c.b16 %v737, %v732
    %v1223 = vpack.c.b16 %v738, %v733
    %v1224 = vpack.c.b16 %v744, %v739
    %v1225 = vpack.c.b16 %v745, %v740
    %v1226 = vpack.c.b16 %v746, %v741
    %v1227 = vpack.c.b16 %v747, %v742
    %v1228 = vpack.c.b16 %v748, %v743
    %v1229 = vpack.c.b16 %v754, %v749
    %v1230 = vpack.c.b16 %v755, %v750
    %v1231 = vpack.c.b16 %v756, %v751
    %v1232 = vpack.c.b16 %v757, %v752
    %v1233 = vpack.c.b16 %v758, %v753
    %v1234 = vpack.c.b16 %v764, %v759
    %v1235 = vpack.c.b16 %v765, %v760
    %v1236 = vpack.c.b16 %v766, %v761
    %v1237 = vpack.c.b16 %v767, %v762
    %v1238 = vpack.c.b16 %v768, %v763
    %v1239 = vpack.c.b16 %v774, %v769
    %v1240 = vpack.c.b16 %v775, %v770
    %v1241 = vpack.c.b16 %v776, %v771
    %v1242 = vpack.c.b16 %v777, %v772
    %v1243 = vpack.c.b16 %v778, %v773
    %v1244 = vpack.c.b16 %v784, %v779
    %v1245 = vpack.c.b16 %v785, %v780
    %v1246 = vpack.c.b16 %v786, %v781
    %v1247 = vpack.c.b16 %v787, %v782
    %v1248 = vpack.c.b16 %v788, %v783
    %v1249 = vpack.c.b16 %v794, %v789
    %v1250 = vpack.c.b16 %v795, %v790
    %v1251 = vpack.c.b16 %v796, %v791
    %v1252 = vpack.c.b16 %v797, %v792
    %v1253 = vpack.c.b16 %v798, %v793
    %v1254 = vpack.c.b16 %v804, %v799
    %v1255 = vpack.c.b16 %v805, %v800
    %v1256 = vpack.c.b16 %v806, %v801
    %v1257 = vpack.c.b16 %v807, %v802
    %v1258 = vpack.c.b16 %v808, %v803
    %v1259 = vpack.c.b16 %v814, %v809
    %v1260 = vpack.c.b16 %v815, %v810
    %v1261 = vpack.c.b16 %v816, %v811
    %v1262 = vpack.c.b16 %v817, %v812
    %v1263 = vpack.c.b16 %v818, %v813
    %v1264 = vpack.c.b16 %v824, %v819
    %v1265 = vpack.c.b16 %v825, %v820
    %v1266 = vpack.c.b16 %v826, %v821
    %v1267 = vpack.c.b16 %v827, %v822
    %v1268 = vpack.c.b16 %v828, %v823
    %v1269 = vpack.c.b16 %v834, %v829
    %v1270 = vpack.c.b16 %v835, %v830
    %v1271 = vpack.c.b16 %v836, %v831
    %v1272 = vpack.c.b16 %v837, %v832
    %v1273 = vpack.c.b16 %v838, %v833
    %v1274 = vpack.c.b16 %v844, %v839
    %v1275 = vpack.c.b16 %v845, %v840
    %v1276 = vpack.c.b16 %v846, %v841
    %v1277 = vpack.c.b16 %v847, %v842
    %v1278 = vpack.c.b16 %v848, %v843
    %v1279 = vpack.c.b16 %v854, %v849
    %v1280 = vpack.c.b16 %v855, %v850
    %v1281 = vpack.c.b16 %v856, %v851
    %v1282 = vpack.c.b16 %v857, %v852
    %v1283 = vpack.c.b16 %v858, %v853
    %v1284 = vpack.c.b16 %v864, %v859
    %v1285 = vpack.c.b16 %v865, %v860
    %v1286 = vpack.c.b16 %v866, %v861
    %v1287 = vpack.c.b16 %v867, %v862
    %v1288 = vpack.c.b16 %v868, %v863
    %v1289 = vpack.c.b16 %v874, %v869
    %v1290 = vpack.c.b16 %v875, %v870
    %v1291 = vpack.c.b16 %v876, %v871
    %v1292 = vpack.c.b16 %v877, %v872
    %v1293 = vpack.c.b16 %v878, %v873
    %v1294 = vpack.c.b16 %v884, %v879
    %v1295 = vpack.c.b16 %v885, %v880
    %v1296 = vpack.c.b16 %v886, %v881
    %v1297 = vpack.c.b16 %v887, %v882
    %v1298 = vpack.c.b16 %v888, %v883
    %v1299 = vpack.c.b16 %v894, %v889
    %v1300 = vpack.c.b16 %v895, %v890
    %v1301 = vpack.c.b16 %v896, %v891
    %v1302 = vpack.c.b16 %v897, %v892
    %v1303 = vpack.c.b16 %v898, %v893
    %v1304 = vpack.c.b16 %v904, %v899
    %v1305 = vpack.c.b16 %v905, %v900
    %v1306 = vpack.c.b16 %v906, %v901
    %v1307 = vpack.c.b16 %v907, %v902
    %v1308 = vpack.c.b16 %v908, %v903
    %v1309 = vpack.c.b16 %v914, %v909
    %v1310 = vpack.c.b16 %v915, %v910
    %v1311 = vpack.c.b16 %v916, %v911
    %v1312 = vpack.c.b16 %v917, %v912
    %v1313 = vpack.c.b16 %v918, %v913
    %v1314 = vpack.c.b16 %v924, %v919
    %v1315 = vpack.c.b16 %v925, %v920
    %v1316 = vpack.c.b16 %v926, %v921
    %v1317 = vpack.c.b16 %v927, %v922
    %v1318 = vpack.c.b16 %v928, %v923
    %v1319 = vpack.c.b16 %v934, %v929
    %v1320 = vpack.c.b16 %v935, %v930
    %v1321 = vpack.c.b16 %v936, %v931
    %v1322 = vpack.c.b16 %v937, %v932
    %v1323 = vpack.c.b16 %v938, %v933
    %v1324 = vpack.c.b16 %v944, %v939
    %v1325 = vpack.c.b16 %v945, %v940
    %v1326 = vpack.c.b16 %v946, %v941
    %v1327 = vpack.c.b16 %v947, %v942
    %v1328 = vpack.c.b16 %v948, %v943
    %v1329 = vpack.c.b16 %v954, %v949
    %v1330 = vpack.c.b16 %v955, %v950
    %v1331 = vpack.c.b16 %v956, %v951
    %v1332 = vpack.c.b16 %v957, %v952
    %v1333 = vpack.c.b16 %v958, %v953
    %v1334 = vpack.c.b16 %v964, %v959
    %v1335 = vpack.c.b16 %v965, %v960
    %v1336 = vpack.c.b16 %v966, %v961
    %v1337 = vpack.c.b16 %v967, %v962
    %v1338 = vpack.c.b16 %v968, %v963
    %v1339 = vpack.c.b16 %v974, %v969
    %v1340 = vpack.c.b16 %v975, %v970
    %v1341 = vpack.c.b16 %v976, %v971
    %v1342 = vpack.c.b16 %v977, %v972
    %v1343 = vpack.c.b16 %v978, %v973
    %v1344 = vpack.c.b16 %v984, %v979
    %v1345 = vpack.c.b16 %v985, %v980
    %v1346 = vpack.c.b16 %v986, %v981
    %v1347 = vpack.c.b16 %v987, %v982
    %v1348 = vpack.c.b16 %v988, %v983
    %v1349 = vpack.c.b16 %v994, %v989
    %v1350 = vpack.c.b16 %v995, %v990
    %v1351 = vpack.c.b16 %v996, %v991
    %v1352 = vpack.c.b16 %v997, %v992
    %v1353 = vpack.c.b16 %v998, %v993
    %v1354 = vpack.c.b16 %v1004, %v999
    %v1355 = vpack.c.b16 %v1005, %v1000
    %v1356 = vpack.c.b16 %v1006, %v1001
    %v1357 = vpack.c.b16 %v1007, %v1002
    %v1358 = vpack.c.b16 %v1008, %v1003
    %v1359 = vpack.c.b16 %v1014, %v1009
    %v1360 = vpack.c.b16 %v1015, %v1010
    %v1361 = vpack.c.b16 %v1016, %v1011
    %v1362 = vpack.c.b16 %v1017, %v1012
    %v1363 = vpack.c.b16 %v1018, %v1013
    %v1364 = vpack.c.b16 %v1024, %v1019
    %v1365 = vpack.c.b16 %v1025, %v1020
    %v1366 = vpack.c.b16 %v1026, %v1021
    %v1367 = vpack.c.b16 %v1027, %v1022
    %v1368 = vpack.c.b16 %v1028, %v1023
    %v1369 = vpack.c.b16 %v1034, %v1029
    %v1370 = vpack.c.b16 %v1035, %v1030
    %v1371 = vpack.c.b16 %v1036, %v1031
    %v1372 = vpack.c.b16 %v1037, %v1032
    %v1373 = vpack.c.b16 %v1038, %v1033
    %v1374 = vpack.c.b16 %v1044, %v1039
    %v1375 = vpack.c.b16 %v1045, %v1040
    %v1376 = vpack.c.b16 %v1046, %v1041
    %v1377 = vpack.c.b16 %v1047, %v1042
    %v1378 = vpack.c.b16 %v1048, %v1043
    %v1379 = vpack.c.b16 %v1054, %v1049
    %v1380 = vpack.c.b16 %v1055, %v1050
    %v1381 = vpack.c.b16 %v1056, %v1051
    %v1382 = vpack.c.b16 %v1057, %v1052
    %v1383 = vpack.c.b16 %v1058, %v1053
    %v1384 = vpack.c.b16 %v1064, %v1059
    %v1385 = vpack.c.b16 %v1065, %v1060
    %v1386 = vpack.c.b16 %v1066, %v1061
    %v1387 = vpack.c.b16 %v1067, %v1062
    %v1388 = vpack.c.b16 %v1068, %v1063
    %v1389 = vpack.c.b16 %v1074, %v1069
    %v1390 = vpack.c.b16 %v1075, %v1070
    %v1391 = vpack.c.b16 %v1076, %v1071
    %v1392 = vpack.c.b16 %v1077, %v1072
    %v1393 = vpack.c.b16 %v1078, %v1073
    %v1394 = vpack.c.b16 %v1084, %v1079
    %v1395 = vpack.c.b16 %v1085, %v1080
    %v1396 = vpack.c.b16 %v1086, %v1081
    %v1397 = vpack.c.b16 %v1087, %v1082
    %v1398 = vpack.c.b16 %v1088, %v1083
    %v1399 = vpack.c.b16 %v1094, %v1089
    %v1400 = vpack.c.b16 %v1095, %v1090
    %v1401 = vpack.c.b16 %v1096, %v1091
    %v1402 = vpack.c.b16 %v1097, %v1092
    %v1403 = vpack.c.b16 %v1098, %v1093
    %v1404 = vpack.c.b16 %v1104, %v1099
    %v1405 = vpack.c.b16 %v1105, %v1100
    %v1406 = vpack.c.b16 %v1106, %v1101
    %v1407 = vpack.c.b16 %v1107, %v1102
    %v1408 = vpack.c.b16 %v1108, %v1103
    %v1409 = vpack.c.b16 %v1114, %v1109
    %v1410 = vpack.c.b16 %v1115, %v1110
    %v1411 = vpack.c.b16 %v1116, %v1111
    %v1412 = vpack.c.b16 %v1117, %v1112
    %v1413 = vpack.c.b16 %v1118, %v1113
    %v1414 = vpack.c.b16 %v1124, %v1119
    %v1415 = vpack.c.b16 %v1125, %v1120
    %v1416 = vpack.c.b16 %v1126, %v1121
    %v1417 = vpack.c.b16 %v1127, %v1122
    %v1418 = vpack.c.b16 %v1128, %v1123
    %v1419 = vpack.c.b16 %v1134, %v1129
    %v1420 = vpack.c.b16 %v1135, %v1130
    %v1421 = vpack.c.b16 %v1136, %v1131
    %v1422 = vpack.c.b16 %v1137, %v1132
    %v1423 = vpack.c.b16 %v1138, %v1133
    %v1424 = vpack.c.b16 %v1144, %v1139
    %v1425 = vpack.c.b16 %v1145, %v1140
    %v1426 = vpack.c.b16 %v1146, %v1141
    %v1427 = vpack.c.b16 %v1147, %v1142
    %v1428 = vpack.c.b16 %v1148, %v1143
    %v1429 = vpack.c.b16 %v1154, %v1149
    %v1430 = vpack.c.b16 %v1155, %v1150
    %v1431 = vpack.c.b16 %v1156, %v1151
    %v1432 = vpack.c.b16 %v1157, %v1152
    %v1433 = vpack.c.b16 %v1158, %v1153
    %v1434 = vpack.c.b16 %v1164, %v1159
    %v1435 = vpack.c.b16 %v1165, %v1160
    %v1436 = vpack.c.b16 %v1166, %v1161
    %v1437 = vpack.c.b16 %v1167, %v1162
    %v1438 = vpack.c.b16 %v1168, %v1163
    %v1439 = vpack.c.b16 %v1174, %v1169
    %v1440 = vpack.c.b16 %v1175, %v1170
    %v1441 = vpack.c.b16 %v1176, %v1171
    %v1442 = vpack.c.b16 %v1177, %v1172
    %v1443 = vpack.c.b16 %v1178, %v1173
    %v1444 = vpack.c.b16 %v1184, %v1179
    %v1445 = vpack.c.b16 %v1185, %v1180
    %v1446 = vpack.c.b16 %v1186, %v1181
    %v1447 = vpack.c.b16 %v1187, %v1182
    %v1448 = vpack.c.b16 %v1188, %v1183
    %v1449 = vpack.c.b16 %v1194, %v1189
    %v1450 = vpack.c.b16 %v1195, %v1190
    %v1451 = vpack.c.b16 %v1196, %v1191
    %v1452 = vpack.c.b16 %v1197, %v1192
    %v1453 = vpack.c.b16 %v1198, %v1193
    %v1454 = vpack.c.b16 %v1204, %v1199
    %v1455 = vpack.c.b16 %v1205, %v1200
    %v1456 = vpack.c.b16 %v1206, %v1201
    %v1457 = vpack.c.b16 %v1207, %v1202
    %v1458 = vpack.c.b16 %v1208, %v1203
    %v1459 = vpack.c.b16 %v1214, %v1209
    %v1460 = vpack.c.b16 %v1215, %v1210
    %v1461 = vpack.c.b16 %v1216, %v1211
    %v1462 = vpack.c.b16 %v1217, %v1212
    %v1463 = vpack.c.b16 %v1218, %v1213
    %vm1709 = vcmask 130048
    %v1711 = vsel %vm1709, %v428, 0
    %1713 = vmatprep.subr.bf16.mxu0 %v1255
    %1714 = vmatpush1.bf16.msra.mxu0 %v1254
    %1715 = vmatprep.subr.bf16.mxu0 %v1250
    %1716 = vmatpush1.bf16.msra.mxu0 %v1249
    %1717 = vmatprep.subr.bf16.mxu0 %v1245
    %1718 = vmatpush1.bf16.msra.mxu0 %v1244
    %1719 = vmatprep.subr.bf16.mxu0 %v1240
    %1720 = vmatpush1.bf16.msra.mxu0 %v1239
    %1721 = vmatprep.subr.bf16.mxu0 %v1235
    %1722 = vmatpush1.bf16.msra.mxu0 %v1234
    %1723 = vmatprep.subr.bf16.mxu0 %v1230
    %1724 = vmatpush1.bf16.msra.mxu0 %v1229
    %1725 = vmatprep.subr.bf16.mxu0 %v1225
    %1726 = vmatpush1.bf16.msra.mxu0 %v1224
    %1727 = vmatprep.subr.bf16.mxu0 %v1220
    %1728 = vmatpush1.bf16.msra.mxu0 %v1219
    %1729 = vmatprep.subr.bf16.mxu0 %v1295
    %1730 = vmatpush2.bf16.msra.mxu0 %v1294
    %1731 = vmatprep.subr.bf16.mxu0 %v1290
    %1732 = vmatpush2.bf16.msra.mxu0 %v1289
    %1733 = vmatprep.subr.bf16.mxu0 %v1285
    %1734 = vmatpush2.bf16.msra.mxu0 %v1284
    %1735 = vmatprep.subr.bf16.mxu0 %v1280
    %1736 = vmatpush2.bf16.msra.mxu0 %v1279
    %1737 = vmatprep.subr.bf16.mxu0 %v1275
    %1738 = vmatpush2.bf16.msra.mxu0 %v1274
    %1739 = vmatprep.subr.bf16.mxu0 %v1270
    %1740 = vmatpush2.bf16.msra.mxu0 %v1269
    %1741 = vmatprep.subr.bf16.mxu0 %v1265
    %1742 = vmatpush2.bf16.msra.mxu0 %v1264
    %1743 = vmatprep.subr.bf16.mxu0 %v1260
    %1744 = vmatpush2.bf16.msra.mxu0 %v1259
    %1745 = vmatprep.mubr.bf16.mxu0 %v423
    %1746 = vmatmul.mubr.bf16.gmra.mxu0 %v422
    %v1747 = vpop.f32.mrf.mxu0
    %v1748 = vadd.f32 %v389, %v1747
    %v1749 = vpop.f32.mrf.mxu0
    %v1750 = vadd.f32 %v393, %v1749
    %v1751 = vpop.f32.mrf.mxu0
    %v1752 = vpop.f32.mrf.mxu0
    %1753 = vdwg.mxu0
    %1754 = vmatprep.subr.bf16.mxu0 %v1335
    %1755 = vmatpush1.bf16.msra.mxu0 %v1334
    %1756 = vmatprep.subr.bf16.mxu0 %v1330
    %1757 = vmatpush1.bf16.msra.mxu0 %v1329
    %1758 = vmatprep.subr.bf16.mxu0 %v1325
    %1759 = vmatpush1.bf16.msra.mxu0 %v1324
    %1760 = vmatprep.subr.bf16.mxu0 %v1320
    %1761 = vmatpush1.bf16.msra.mxu0 %v1319
    %1762 = vmatprep.subr.bf16.mxu0 %v1315
    %1763 = vmatpush1.bf16.msra.mxu0 %v1314
    %1764 = vmatprep.subr.bf16.mxu0 %v1310
    %1765 = vmatpush1.bf16.msra.mxu0 %v1309
    %1766 = vmatprep.subr.bf16.mxu0 %v1305
    %1767 = vmatpush1.bf16.msra.mxu0 %v1304
    %1768 = vmatprep.subr.bf16.mxu0 %v1300
    %1769 = vmatpush1.bf16.msra.mxu0 %v1299
    %1770 = vmatprep.subr.bf16.mxu0 %v1375
    %1771 = vmatpush2.bf16.msra.mxu0 %v1374
    %1772 = vmatprep.subr.bf16.mxu0 %v1370
    %1773 = vmatpush2.bf16.msra.mxu0 %v1369
    %1774 = vmatprep.subr.bf16.mxu0 %v1365
    %1775 = vmatpush2.bf16.msra.mxu0 %v1364
    %1776 = vmatprep.subr.bf16.mxu0 %v1360
    %1777 = vmatpush2.bf16.msra.mxu0 %v1359
    %1778 = vmatprep.subr.bf16.mxu0 %v1355
    %1779 = vmatpush2.bf16.msra.mxu0 %v1354
    %1780 = vmatprep.subr.bf16.mxu0 %v1350
    %1781 = vmatpush2.bf16.msra.mxu0 %v1349
    %1782 = vmatprep.subr.bf16.mxu0 %v1345
    %1783 = vmatpush2.bf16.msra.mxu0 %v1344
    %1784 = vmatprep.subr.bf16.mxu0 %v1340
    %1785 = vmatpush2.bf16.msra.mxu0 %v1339
    %1786 = vmatprep.mubr.bf16.mxu0 %v425
    %1787 = vmatmul.mubr.bf16.gmra.mxu0 %v424
    %v1788 = vpop.f32.mrf.mxu0
    %v1789 = vadd.f32 %v1748, %v1788
    %v1790 = vpop.f32.mrf.mxu0
    %v1791 = vadd.f32 %v1750, %v1790
    %v1792 = vpop.f32.mrf.mxu0
    %v1793 = vpop.f32.mrf.mxu0
    %1794 = vdwg.mxu0
    %1795 = vmatprep.subr.bf16.mxu0 %v1415
    %1796 = vmatpush1.bf16.msra.mxu0 %v1414
    %1797 = vmatprep.subr.bf16.mxu0 %v1410
    %1798 = vmatpush1.bf16.msra.mxu0 %v1409
    %1799 = vmatprep.subr.bf16.mxu0 %v1405
    %1800 = vmatpush1.bf16.msra.mxu0 %v1404
    %1801 = vmatprep.subr.bf16.mxu0 %v1400
    %1802 = vmatpush1.bf16.msra.mxu0 %v1399
    %1803 = vmatprep.subr.bf16.mxu0 %v1395
    %1804 = vmatpush1.bf16.msra.mxu0 %v1394
    %1805 = vmatprep.subr.bf16.mxu0 %v1390
    %1806 = vmatpush1.bf16.msra.mxu0 %v1389
    %1807 = vmatprep.subr.bf16.mxu0 %v1385
    %1808 = vmatpush1.bf16.msra.mxu0 %v1384
    %1809 = vmatprep.subr.bf16.mxu0 %v1380
    %1810 = vmatpush1.bf16.msra.mxu0 %v1379
    %1811 = vmatprep.subr.bf16.mxu0 %v1455
    %1812 = vmatpush2.bf16.msra.mxu0 %v1454
    %1813 = vmatprep.subr.bf16.mxu0 %v1450
    %1814 = vmatpush2.bf16.msra.mxu0 %v1449
    %1815 = vmatprep.subr.bf16.mxu0 %v1445
    %1816 = vmatpush2.bf16.msra.mxu0 %v1444
    %1817 = vmatprep.subr.bf16.mxu0 %v1440
    %1818 = vmatpush2.bf16.msra.mxu0 %v1439
    %1819 = vmatprep.subr.bf16.mxu0 %v1435
    %1820 = vmatpush2.bf16.msra.mxu0 %v1434
    %1821 = vmatprep.subr.bf16.mxu0 %v1430
    %1822 = vmatpush2.bf16.msra.mxu0 %v1429
    %1823 = vmatprep.subr.bf16.mxu0 %v1425
    %1824 = vmatpush2.bf16.msra.mxu0 %v1424
    %1825 = vmatprep.subr.bf16.mxu0 %v1420
    %1826 = vmatpush2.bf16.msra.mxu0 %v1419
    %1827 = vmatprep.mubr.bf16.mxu0 %v427
    %1828 = vmatmul.mubr.bf16.gmra.mxu0 %v426
    %v1829 = vpop.f32.mrf.mxu0
    %v1830 = vadd.f32 %v1789, %v1829
    %v1831 = vpop.f32.mrf.mxu0
    %v1832 = vadd.f32 %v1791, %v1831
    %v1833 = vpop.f32.mrf.mxu0
    %v1834 = vpop.f32.mrf.mxu0
    %1835 = vdwg.mxu0
    %1836 = vmatprep.subr.bf16.mxu0 0
    %1837 = vmatpush1.bf16.msra.mxu0 0
    %1838 = vmatprep.subr.bf16.mxu0 0
    %1839 = vmatpush1.bf16.msra.mxu0 0
    %1840 = vmatprep.subr.bf16.mxu0 0
    %1841 = vmatpush1.bf16.msra.mxu0 0
    %1842 = vmatprep.subr.bf16.mxu0 0
    %1843 = vmatpush1.bf16.msra.mxu0 0
    %1844 = vmatprep.subr.bf16.mxu0 0
    %1845 = vmatpush1.bf16.msra.mxu0 0
    %1846 = vmatprep.subr.bf16.mxu0 0
    %1847 = vmatpush1.bf16.msra.mxu0 0
    %1848 = vmatprep.subr.bf16.mxu0 0
    %1849 = vmatpush1.bf16.msra.mxu0 0
    %1850 = vmatprep.subr.bf16.mxu0 %v1460
    %1851 = vmatpush1.bf16.msra.mxu0 %v1459
    %1852 = vmatprep.subr.bf16.mxu0 0
    %1853 = vmatpush2.bf16.msra.mxu0 0
    %1854 = vmatprep.subr.bf16.mxu0 0
    %1855 = vmatpush2.bf16.msra.mxu0 0
    %1856 = vmatprep.subr.bf16.mxu0 0
    %1857 = vmatpush2.bf16.msra.mxu0 0
    %1858 = vmatprep.subr.bf16.mxu0 0
    %1859 = vmatpush2.bf16.msra.mxu0 0
    %1860 = vmatprep.subr.bf16.mxu0 0
    %1861 = vmatpush2.bf16.msra.mxu0 0
    %1862 = vmatprep.subr.bf16.mxu0 0
    %1863 = vmatpush2.bf16.msra.mxu0 0
    %1864 = vmatprep.subr.bf16.mxu0 0
    %1865 = vmatpush2.bf16.msra.mxu0 0
    %1866 = vmatprep.subr.bf16.mxu0 0
    %1867 = vmatpush2.bf16.msra.mxu0 0
    %1868 = vmatprep.mubr.bf16.mxu0 0
    %1869 = vmatmul.mubr.bf16.gmra.mxu0 %v1711
    %v1870 = vpop.f32.mrf.mxu0
    %v1871 = vadd.f32 %v1830, %v1870
    %v1872 = vpop.f32.mrf.mxu0
    %v1873 = vadd.f32 %v1832, %v1872
    %v1874 = vpop.f32.mrf.mxu0
    %v1875 = vpop.f32.mrf.mxu0
    %1876 = vdwg.mxu0
    %1877 = vmatprep.subr.bf16.mxu0 %v1257
    %1878 = vmatpush1.bf16.msra.mxu0 %v1256
    %1879 = vmatprep.subr.bf16.mxu0 %v1252
    %1880 = vmatpush1.bf16.msra.mxu0 %v1251
    %1881 = vmatprep.subr.bf16.mxu0 %v1247
    %1882 = vmatpush1.bf16.msra.mxu0 %v1246
    %1883 = vmatprep.subr.bf16.mxu0 %v1242
    %1884 = vmatpush1.bf16.msra.mxu0 %v1241
    %1885 = vmatprep.subr.bf16.mxu0 %v1237
    %1886 = vmatpush1.bf16.msra.mxu0 %v1236
    %1887 = vmatprep.subr.bf16.mxu0 %v1232
    %1888 = vmatpush1.bf16.msra.mxu0 %v1231
    %1889 = vmatprep.subr.bf16.mxu0 %v1227
    %1890 = vmatpush1.bf16.msra.mxu0 %v1226
    %1891 = vmatprep.subr.bf16.mxu0 %v1222
    %1892 = vmatpush1.bf16.msra.mxu0 %v1221
    %1893 = vmatprep.subr.bf16.mxu0 %v1297
    %1894 = vmatpush2.bf16.msra.mxu0 %v1296
    %1895 = vmatprep.subr.bf16.mxu0 %v1292
    %1896 = vmatpush2.bf16.msra.mxu0 %v1291
    %1897 = vmatprep.subr.bf16.mxu0 %v1287
    %1898 = vmatpush2.bf16.msra.mxu0 %v1286
    %1899 = vmatprep.subr.bf16.mxu0 %v1282
    %1900 = vmatpush2.bf16.msra.mxu0 %v1281
    %1901 = vmatprep.subr.bf16.mxu0 %v1277
    %1902 = vmatpush2.bf16.msra.mxu0 %v1276
    %1903 = vmatprep.subr.bf16.mxu0 %v1272
    %1904 = vmatpush2.bf16.msra.mxu0 %v1271
    %1905 = vmatprep.subr.bf16.mxu0 %v1267
    %1906 = vmatpush2.bf16.msra.mxu0 %v1266
    %1907 = vmatprep.subr.bf16.mxu0 %v1262
    %1908 = vmatpush2.bf16.msra.mxu0 %v1261
    %1909 = vmatprep.mubr.bf16.mxu0 %v423
    %1910 = vmatmul.mubr.bf16.gmra.mxu0 %v422
    %v1911 = vpop.f32.mrf.mxu0
    %v1912 = vadd.f32 %v397, %v1911
    %v1913 = vpop.f32.mrf.mxu0
    %v1914 = vadd.f32 %v401, %v1913
    %v1915 = vpop.f32.mrf.mxu0
    %v1916 = vpop.f32.mrf.mxu0
    %1917 = vdwg.mxu0
    %1918 = vmatprep.subr.bf16.mxu0 %v1337
    %1919 = vmatpush1.bf16.msra.mxu0 %v1336
    %1920 = vmatprep.subr.bf16.mxu0 %v1332
    %1921 = vmatpush1.bf16.msra.mxu0 %v1331
    %1922 = vmatprep.subr.bf16.mxu0 %v1327
    %1923 = vmatpush1.bf16.msra.mxu0 %v1326
    %1924 = vmatprep.subr.bf16.mxu0 %v1322
    %1925 = vmatpush1.bf16.msra.mxu0 %v1321
    %1926 = vmatprep.subr.bf16.mxu0 %v1317
    %1927 = vmatpush1.bf16.msra.mxu0 %v1316
    %1928 = vmatprep.subr.bf16.mxu0 %v1312
    %1929 = vmatpush1.bf16.msra.mxu0 %v1311
    %1930 = vmatprep.subr.bf16.mxu0 %v1307
    %1931 = vmatpush1.bf16.msra.mxu0 %v1306
    %1932 = vmatprep.subr.bf16.mxu0 %v1302
    %1933 = vmatpush1.bf16.msra.mxu0 %v1301
    %1934 = vmatprep.subr.bf16.mxu0 %v1377
    %1935 = vmatpush2.bf16.msra.mxu0 %v1376
    %1936 = vmatprep.subr.bf16.mxu0 %v1372
    %1937 = vmatpush2.bf16.msra.mxu0 %v1371
    %1938 = vmatprep.subr.bf16.mxu0 %v1367
    %1939 = vmatpush2.bf16.msra.mxu0 %v1366
    %1940 = vmatprep.subr.bf16.mxu0 %v1362
    %1941 = vmatpush2.bf16.msra.mxu0 %v1361
    %1942 = vmatprep.subr.bf16.mxu0 %v1357
    %1943 = vmatpush2.bf16.msra.mxu0 %v1356
    %1944 = vmatprep.subr.bf16.mxu0 %v1352
    %1945 = vmatpush2.bf16.msra.mxu0 %v1351
    %1946 = vmatprep.subr.bf16.mxu0 %v1347
    %1947 = vmatpush2.bf16.msra.mxu0 %v1346
    %1948 = vmatprep.subr.bf16.mxu0 %v1342
    %1949 = vmatpush2.bf16.msra.mxu0 %v1341
    %1950 = vmatprep.mubr.bf16.mxu0 %v425
    %1951 = vmatmul.mubr.bf16.gmra.mxu0 %v424
    %v1952 = vpop.f32.mrf.mxu0
    %v1953 = vadd.f32 %v1912, %v1952
    %v1954 = vpop.f32.mrf.mxu0
    %v1955 = vadd.f32 %v1914, %v1954
    %v1956 = vpop.f32.mrf.mxu0
    %v1957 = vpop.f32.mrf.mxu0
    %1958 = vdwg.mxu0
    %1959 = vmatprep.subr.bf16.mxu0 %v1417
    %1960 = vmatpush1.bf16.msra.mxu0 %v1416
    %1961 = vmatprep.subr.bf16.mxu0 %v1412
    %1962 = vmatpush1.bf16.msra.mxu0 %v1411
    %1963 = vmatprep.subr.bf16.mxu0 %v1407
    %1964 = vmatpush1.bf16.msra.mxu0 %v1406
    %1965 = vmatprep.subr.bf16.mxu0 %v1402
    %1966 = vmatpush1.bf16.msra.mxu0 %v1401
    %1967 = vmatprep.subr.bf16.mxu0 %v1397
    %1968 = vmatpush1.bf16.msra.mxu0 %v1396
    %1969 = vmatprep.subr.bf16.mxu0 %v1392
    %1970 = vmatpush1.bf16.msra.mxu0 %v1391
    %1971 = vmatprep.subr.bf16.mxu0 %v1387
    %1972 = vmatpush1.bf16.msra.mxu0 %v1386
    %1973 = vmatprep.subr.bf16.mxu0 %v1382
    %1974 = vmatpush1.bf16.msra.mxu0 %v1381
    %1975 = vmatprep.subr.bf16.mxu0 %v1457
    %1976 = vmatpush2.bf16.msra.mxu0 %v1456
    %1977 = vmatprep.subr.bf16.mxu0 %v1452
    %1978 = vmatpush2.bf16.msra.mxu0 %v1451
    %1979 = vmatprep.subr.bf16.mxu0 %v1447
    %1980 = vmatpush2.bf16.msra.mxu0 %v1446
    %1981 = vmatprep.subr.bf16.mxu0 %v1442
    %1982 = vmatpush2.bf16.msra.mxu0 %v1441
    %1983 = vmatprep.subr.bf16.mxu0 %v1437
    %1984 = vmatpush2.bf16.msra.mxu0 %v1436
    %1985 = vmatprep.subr.bf16.mxu0 %v1432
    %1986 = vmatpush2.bf16.msra.mxu0 %v1431
    %1987 = vmatprep.subr.bf16.mxu0 %v1427
    %1988 = vmatpush2.bf16.msra.mxu0 %v1426
    %1989 = vmatprep.subr.bf16.mxu0 %v1422
    %1990 = vmatpush2.bf16.msra.mxu0 %v1421
    %1991 = vmatprep.mubr.bf16.mxu0 %v427
    %1992 = vmatmul.mubr.bf16.gmra.mxu0 %v426
    %v1993 = vpop.f32.mrf.mxu0
    %v1994 = vadd.f32 %v1953, %v1993
    %v1995 = vpop.f32.mrf.mxu0
    %v1996 = vadd.f32 %v1955, %v1995
    %v1997 = vpop.f32.mrf.mxu0
    %v1998 = vpop.f32.mrf.mxu0
    %1999 = vdwg.mxu0
    %2000 = vmatprep.subr.bf16.mxu0 0
    %2001 = vmatpush1.bf16.msra.mxu0 0
    %2002 = vmatprep.subr.bf16.mxu0 0
    %2003 = vmatpush1.bf16.msra.mxu0 0
    %2004 = vmatprep.subr.bf16.mxu0 0
    %2005 = vmatpush1.bf16.msra.mxu0 0
    %2006 = vmatprep.subr.bf16.mxu0 0
    %2007 = vmatpush1.bf16.msra.mxu0 0
    %2008 = vmatprep.subr.bf16.mxu0 0
    %2009 = vmatpush1.bf16.msra.mxu0 0
    %2010 = vmatprep.subr.bf16.mxu0 0
    %2011 = vmatpush1.bf16.msra.mxu0 0
    %2012 = vmatprep.subr.bf16.mxu0 0
    %2013 = vmatpush1.bf16.msra.mxu0 0
    %2014 = vmatprep.subr.bf16.mxu0 %v1462
    %2015 = vmatpush1.bf16.msra.mxu0 %v1461
    %2016 = vmatprep.subr.bf16.mxu0 0
    %2017 = vmatpush2.bf16.msra.mxu0 0
    %2018 = vmatprep.subr.bf16.mxu0 0
    %2019 = vmatpush2.bf16.msra.mxu0 0
    %2020 = vmatprep.subr.bf16.mxu0 0
    %2021 = vmatpush2.bf16.msra.mxu0 0
    %2022 = vmatprep.subr.bf16.mxu0 0
    %2023 = vmatpush2.bf16.msra.mxu0 0
    %2024 = vmatprep.subr.bf16.mxu0 0
    %2025 = vmatpush2.bf16.msra.mxu0 0
    %2026 = vmatprep.subr.bf16.mxu0 0
    %2027 = vmatpush2.bf16.msra.mxu0 0
    %2028 = vmatprep.subr.bf16.mxu0 0
    %2029 = vmatpush2.bf16.msra.mxu0 0
    %2030 = vmatprep.subr.bf16.mxu0 0
    %2031 = vmatpush2.bf16.msra.mxu0 0
    %2032 = vmatprep.mubr.bf16.mxu0 0
    %2033 = vmatmul.mubr.bf16.gmra.mxu0 %v1711
    %v2034 = vpop.f32.mrf.mxu0
    %v2035 = vadd.f32 %v1994, %v2034
    %v2036 = vpop.f32.mrf.mxu0
    %v2037 = vadd.f32 %v1996, %v2036
    %v2038 = vpop.f32.mrf.mxu0
    %v2039 = vpop.f32.mrf.mxu0
    %2040 = vdwg.mxu0
    %2041 = vmatprep.subr.bf16.mxu0 0
    %2042 = vmatpush1.bf16.msra.mxu0 %v1258
    %2043 = vmatprep.subr.bf16.mxu0 0
    %2044 = vmatpush1.bf16.msra.mxu0 %v1253
    %2045 = vmatprep.subr.bf16.mxu0 0
    %2046 = vmatpush1.bf16.msra.mxu0 %v1248
    %2047 = vmatprep.subr.bf16.mxu0 0
    %2048 = vmatpush1.bf16.msra.mxu0 %v1243
    %2049 = vmatprep.subr.bf16.mxu0 0
    %2050 = vmatpush1.bf16.msra.mxu0 %v1238
    %2051 = vmatprep.subr.bf16.mxu0 0
    %2052 = vmatpush1.bf16.msra.mxu0 %v1233
    %2053 = vmatprep.subr.bf16.mxu0 0
    %2054 = vmatpush1.bf16.msra.mxu0 %v1228
    %2055 = vmatprep.subr.bf16.mxu0 0
    %2056 = vmatpush1.bf16.msra.mxu0 %v1223
    %2057 = vmatprep.subr.bf16.mxu0 0
    %2058 = vmatpush2.bf16.msra.mxu0 %v1298
    %2059 = vmatprep.subr.bf16.mxu0 0
    %2060 = vmatpush2.bf16.msra.mxu0 %v1293
    %2061 = vmatprep.subr.bf16.mxu0 0
    %2062 = vmatpush2.bf16.msra.mxu0 %v1288
    %2063 = vmatprep.subr.bf16.mxu0 0
    %2064 = vmatpush2.bf16.msra.mxu0 %v1283
    %2065 = vmatprep.subr.bf16.mxu0 0
    %2066 = vmatpush2.bf16.msra.mxu0 %v1278
    %2067 = vmatprep.subr.bf16.mxu0 0
    %2068 = vmatpush2.bf16.msra.mxu0 %v1273
    %2069 = vmatprep.subr.bf16.mxu0 0
    %2070 = vmatpush2.bf16.msra.mxu0 %v1268
    %2071 = vmatprep.subr.bf16.mxu0 0
    %2072 = vmatpush2.bf16.msra.mxu0 %v1263
    %2073 = vmatprep.mubr.bf16.mxu0 %v423
    %2074 = vmatmul.mubr.bf16.gmra.mxu0 %v422
    %v2075 = vpop.f32.mrf.mxu0
    %v2076 = vadd.f32 %v405, %v2075
    %v2077 = vpop.f32.mrf.mxu0
    %v2078 = vpop.f32.mrf.mxu0
    %v2079 = vpop.f32.mrf.mxu0
    %2080 = vdwg.mxu0
    %2081 = vmatprep.subr.bf16.mxu0 0
    %2082 = vmatpush1.bf16.msra.mxu0 %v1338
    %2083 = vmatprep.subr.bf16.mxu0 0
    %2084 = vmatpush1.bf16.msra.mxu0 %v1333
    %2085 = vmatprep.subr.bf16.mxu0 0
    %2086 = vmatpush1.bf16.msra.mxu0 %v1328
    %2087 = vmatprep.subr.bf16.mxu0 0
    %2088 = vmatpush1.bf16.msra.mxu0 %v1323
    %2089 = vmatprep.subr.bf16.mxu0 0
    %2090 = vmatpush1.bf16.msra.mxu0 %v1318
    %2091 = vmatprep.subr.bf16.mxu0 0
    %2092 = vmatpush1.bf16.msra.mxu0 %v1313
    %2093 = vmatprep.subr.bf16.mxu0 0
    %2094 = vmatpush1.bf16.msra.mxu0 %v1308
    %2095 = vmatprep.subr.bf16.mxu0 0
    %2096 = vmatpush1.bf16.msra.mxu0 %v1303
    %2097 = vmatprep.subr.bf16.mxu0 0
    %2098 = vmatpush2.bf16.msra.mxu0 %v1378
    %2099 = vmatprep.subr.bf16.mxu0 0
    %2100 = vmatpush2.bf16.msra.mxu0 %v1373
    %2101 = vmatprep.subr.bf16.mxu0 0
    %2102 = vmatpush2.bf16.msra.mxu0 %v1368
    %2103 = vmatprep.subr.bf16.mxu0 0
    %2104 = vmatpush2.bf16.msra.mxu0 %v1363
    %2105 = vmatprep.subr.bf16.mxu0 0
    %2106 = vmatpush2.bf16.msra.mxu0 %v1358
    %2107 = vmatprep.subr.bf16.mxu0 0
    %2108 = vmatpush2.bf16.msra.mxu0 %v1353
    %2109 = vmatprep.subr.bf16.mxu0 0
    %2110 = vmatpush2.bf16.msra.mxu0 %v1348
    %2111 = vmatprep.subr.bf16.mxu0 0
    %2112 = vmatpush2.bf16.msra.mxu0 %v1343
    %2113 = vmatprep.mubr.bf16.mxu0 %v425
    %2114 = vmatmul.mubr.bf16.gmra.mxu0 %v424
    %v2115 = vpop.f32.mrf.mxu0
    %v2116 = vadd.f32 %v2076, %v2115
    %v2117 = vpop.f32.mrf.mxu0
    %v2118 = vpop.f32.mrf.mxu0
    %v2119 = vpop.f32.mrf.mxu0
    %2120 = vdwg.mxu0
    %2121 = vmatprep.subr.bf16.mxu0 0
    %2122 = vmatpush1.bf16.msra.mxu0 %v1418
    %2123 = vmatprep.subr.bf16.mxu0 0
    %2124 = vmatpush1.bf16.msra.mxu0 %v1413
    %2125 = vmatprep.subr.bf16.mxu0 0
    %2126 = vmatpush1.bf16.msra.mxu0 %v1408
    %2127 = vmatprep.subr.bf16.mxu0 0
    %2128 = vmatpush1.bf16.msra.mxu0 %v1403
    %2129 = vmatprep.subr.bf16.mxu0 0
    %2130 = vmatpush1.bf16.msra.mxu0 %v1398
    %2131 = vmatprep.subr.bf16.mxu0 0
    %2132 = vmatpush1.bf16.msra.mxu0 %v1393
    %2133 = vmatprep.subr.bf16.mxu0 0
    %2134 = vmatpush1.bf16.msra.mxu0 %v1388
    %2135 = vmatprep.subr.bf16.mxu0 0
    %2136 = vmatpush1.bf16.msra.mxu0 %v1383
    %2137 = vmatprep.subr.bf16.mxu0 0
    %2138 = vmatpush2.bf16.msra.mxu0 %v1458
    %2139 = vmatprep.subr.bf16.mxu0 0
    %2140 = vmatpush2.bf16.msra.mxu0 %v1453
    %2141 = vmatprep.subr.bf16.mxu0 0
    %2142 = vmatpush2.bf16.msra.mxu0 %v1448
    %2143 = vmatprep.subr.bf16.mxu0 0
    %2144 = vmatpush2.bf16.msra.mxu0 %v1443
    %2145 = vmatprep.subr.bf16.mxu0 0
    %2146 = vmatpush2.bf16.msra.mxu0 %v1438
    %2147 = vmatprep.subr.bf16.mxu0 0
    %2148 = vmatpush2.bf16.msra.mxu0 %v1433
    %2149 = vmatprep.subr.bf16.mxu0 0
    %2150 = vmatpush2.bf16.msra.mxu0 %v1428
    %2151 = vmatprep.subr.bf16.mxu0 0
    %2152 = vmatpush2.bf16.msra.mxu0 %v1423
    %2153 = vmatprep.mubr.bf16.mxu0 %v427
    %2154 = vmatmul.mubr.bf16.gmra.mxu0 %v426
    %v2155 = vpop.f32.mrf.mxu0
    %v2156 = vadd.f32 %v2116, %v2155
    %v2157 = vpop.f32.mrf.mxu0
    %v2158 = vpop.f32.mrf.mxu0
    %v2159 = vpop.f32.mrf.mxu0
    %2160 = vdwg.mxu0
    %2161 = vmatprep.subr.bf16.mxu0 0
    %2162 = vmatpush1.bf16.msra.mxu0 0
    %2163 = vmatprep.subr.bf16.mxu0 0
    %2164 = vmatpush1.bf16.msra.mxu0 0
    %2165 = vmatprep.subr.bf16.mxu0 0
    %2166 = vmatpush1.bf16.msra.mxu0 0
    %2167 = vmatprep.subr.bf16.mxu0 0
    %2168 = vmatpush1.bf16.msra.mxu0 0
    %2169 = vmatprep.subr.bf16.mxu0 0
    %2170 = vmatpush1.bf16.msra.mxu0 0
    %2171 = vmatprep.subr.bf16.mxu0 0
    %2172 = vmatpush1.bf16.msra.mxu0 0
    %2173 = vmatprep.subr.bf16.mxu0 0
    %2174 = vmatpush1.bf16.msra.mxu0 0
    %2175 = vmatprep.subr.bf16.mxu0 0
    %2176 = vmatpush1.bf16.msra.mxu0 %v1463
    %2177 = vmatprep.subr.bf16.mxu0 0
    %2178 = vmatpush2.bf16.msra.mxu0 0
    %2179 = vmatprep.subr.bf16.mxu0 0
    %2180 = vmatpush2.bf16.msra.mxu0 0
    %2181 = vmatprep.subr.bf16.mxu0 0
    %2182 = vmatpush2.bf16.msra.mxu0 0
    %2183 = vmatprep.subr.bf16.mxu0 0
    %2184 = vmatpush2.bf16.msra.mxu0 0
    %2185 = vmatprep.subr.bf16.mxu0 0
    %2186 = vmatpush2.bf16.msra.mxu0 0
    %2187 = vmatprep.subr.bf16.mxu0 0
    %2188 = vmatpush2.bf16.msra.mxu0 0
    %2189 = vmatprep.subr.bf16.mxu0 0
    %2190 = vmatpush2.bf16.msra.mxu0 0
    %2191 = vmatprep.subr.bf16.mxu0 0
    %2192 = vmatpush2.bf16.msra.mxu0 0
    %2193 = vmatprep.mubr.bf16.mxu0 0
    %2194 = vmatmul.mubr.bf16.gmra.mxu0 %v1711
    %v2195 = vpop.f32.mrf.mxu0
    %v2196 = vadd.f32 %v2156, %v2195
    %v2197 = vpop.f32.mrf.mxu0
    %v2198 = vpop.f32.mrf.mxu0
    %v2199 = vpop.f32.mrf.mxu0
    %2200 = vdwg.mxu0
    %v2201 = vmul.f32 %v1871, 0.5
    %v2202 = vmul.f32 %v1873, 0.5
    %v2203 = vmul.f32 %v2035, 0.5
    %v2204 = vmul.f32 %v2037, 0.5
    %v2205 = vmul.f32 %v2196, 0.5
    %v2206 = vtanh.pop %v2201
    %v2207 = vtanh.pop %v2202
    %v2208 = vtanh.pop %v2203
    %v2209 = vtanh.pop %v2204
    %v2210 = vtanh.pop %v2205
    %v2211 = vmul.f32 %v2206, 0.5
    %v2212 = vmul.f32 %v2207, 0.5
    %v2213 = vmul.f32 %v2208, 0.5
    %v2214 = vmul.f32 %v2209, 0.5
    %v2215 = vmul.f32 %v2210, 0.5
    %v2216 = vadd.f32 %v2211, 0.5
    %v2217 = vadd.f32 %v2212, 0.5
    %v2218 = vadd.f32 %v2213, 0.5
    %v2219 = vadd.f32 %v2214, 0.5
    %v2220 = vadd.f32 %v2215, 0.5
    %v2221 = vpack.c.bf16 %v2216, %v2216
    %v2222 = vpack.c.bf16 %v2217, %v2217
    %v2223 = vpack.c.bf16 %v2218, %v2218
    %v2224 = vpack.c.bf16 %v2219, %v2219
    %v2225 = vpack.c.bf16 %v2220, %v2220
    %v2226 = vld [vmem:[#allocation8] sm:$0xf]
    %v2227 = vld [vmem:[#allocation8 + $0x4] sm:$0xf]
    %v2228 = vld [vmem:[#allocation8 + $0x8] sm:$0xf]
    %v2229 = vld [vmem:[#allocation8 + $0xc] sm:$0xf]
    %v2230 = vld [vmem:[#allocation8 + $0x10] sm:$0xf]
    %v2231 = vld [vmem:[#allocation8 + $0x14] sm:$0xf]
    %v2232 = vld [vmem:[#allocation8 + $0x18] sm:$0xf]
    %v2233 = vld [vmem:[#allocation8 + $0x1c] sm:$0xf]
    %v2234 = vld [vmem:[#allocation8 + $0x20] sm:$0xf]
    %v2235 = vld [vmem:[#allocation8 + $0x24] sm:$0xf]
    %v2236 = vld [vmem:[#allocation8 + $0x28] sm:$0xf]
    %v2237 = vld [vmem:[#allocation8 + $0x2c] sm:$0xf]
    %v2238 = vld [vmem:[#allocation8 + $0x30] sm:$0xf]
    %v2239 = vld [vmem:[#allocation8 + $0x34] sm:$0xf]
    %v2240 = vld [vmem:[#allocation8 + $0x38] sm:$0xf]
    %v2241 = vld [vmem:[#allocation8 + $0x3c] sm:$0xf]
    %v2242 = vld [vmem:[#allocation8 + $0x40] sm:$0xf]
    %v2243 = vld [vmem:[#allocation8 + $0x44] sm:$0xf]
    %v2244 = vld [vmem:[#allocation8 + $0x48] sm:$0xf]
    %v2245 = vld [vmem:[#allocation8 + $0x4c] sm:$0xf]
    %v2246 = vld [vmem:[#allocation8 + $0x50] sm:$0xf]
    %v2247 = vld [vmem:[#allocation8 + $0x54] sm:$0xf]
    %v2248 = vld [vmem:[#allocation8 + $0x58] sm:$0xf]
    %v2249 = vld [vmem:[#allocation8 + $0x5c] sm:$0xf]
    %v2250 = vld [vmem:[#allocation8 + $0x60] sm:$0xf]
    %v2251 = vld [vmem:[#allocation8 + $0x64] sm:$0xf]
    %v2252 = vld [vmem:[#allocation8 + $0x68] sm:$0xf]
    %v2253 = vld [vmem:[#allocation8 + $0x6c] sm:$0xf]
    %v2254 = vld [vmem:[#allocation8 + $0x70] sm:$0xf]
    %v2255 = vld [vmem:[#allocation8 + $0x74] sm:$0xf]
    %v2256 = vld [vmem:[#allocation8 + $0x78] sm:$0xf]
    %v2257 = vld [vmem:[#allocation8 + $0x7c] sm:$0xf]
    %v2258 = vld [vmem:[#allocation8 + $0x80] sm:$0xf]
    %v2259 = vld [vmem:[#allocation8 + $0x84] sm:$0xf]
    %v2260 = vld [vmem:[#allocation8 + $0x88] sm:$0xf]
    %v2261 = vld [vmem:[#allocation8 + $0x8c] sm:$0xf]
    %v2262 = vld [vmem:[#allocation8 + $0x90] sm:$0xf]
    %v2263 = vld [vmem:[#allocation8 + $0x94] sm:$0xf]
    %v2264 = vld [vmem:[#allocation8 + $0x98] sm:$0xf]
    %v2265 = vld [vmem:[#allocation8 + $0x9c] sm:$0xf]
    %v2266 = vld [vmem:[#allocation8 + $0xa0] sm:$0xf]
    %v2267 = vld [vmem:[#allocation8 + $0xa4] sm:$0xf]
    %v2268 = vld [vmem:[#allocation8 + $0xa8] sm:$0xf]
    %v2269 = vld [vmem:[#allocation8 + $0xac] sm:$0xf]
    %v2270 = vld [vmem:[#allocation8 + $0xb0] sm:$0xf]
    %v2271 = vld [vmem:[#allocation8 + $0xb4] sm:$0xf]
    %v2272 = vld [vmem:[#allocation8 + $0xb8] sm:$0xf]
    %v2273 = vld [vmem:[#allocation8 + $0xbc] sm:$0xf]
    %v2274 = vld [vmem:[#allocation8 + $0xc0] sm:$0xf]
    %v2275 = vld [vmem:[#allocation8 + $0xc4] sm:$0xf]
    %v2276 = vld [vmem:[#allocation8 + $0xc8] sm:$0xf]
    %v2277 = vld [vmem:[#allocation8 + $0xcc] sm:$0xf]
    %v2278 = vld [vmem:[#allocation8 + $0xd0] sm:$0xf]
    %v2279 = vld [vmem:[#allocation8 + $0xd4] sm:$0xf]
    %v2280 = vld [vmem:[#allocation8 + $0xd8] sm:$0xf]
    %v2281 = vld [vmem:[#allocation8 + $0xdc] sm:$0xf]
    %v2282 = vld [vmem:[#allocation8 + $0xe0] sm:$0xf]
    %v2283 = vld [vmem:[#allocation8 + $0xe4] sm:$0xf]
    %v2284 = vld [vmem:[#allocation8 + $0xe8] sm:$0xf]
    %v2285 = vld [vmem:[#allocation8 + $0xec] sm:$0xf]
    %v2286 = vld [vmem:[#allocation8 + $0xf0] sm:$0xf]
    %v2287 = vld [vmem:[#allocation8 + $0xf4] sm:$0xf]
    %v2288 = vld [vmem:[#allocation8 + $0xf8] sm:$0xf]
    %v2289 = vld [vmem:[#allocation8 + $0xfc] sm:$0xf]
    %v2290 = vld [vmem:[#allocation8 + $0x100] sm:$0xf]
    %v2291 = vld [vmem:[#allocation8 + $0x104] sm:$0xf]
    %v2292 = vld [vmem:[#allocation8 + $0x108] sm:$0xf]
    %v2293 = vld [vmem:[#allocation8 + $0x10c] sm:$0xf]
    %v2294 = vld [vmem:[#allocation8 + $0x110] sm:$0xf]
    %v2295 = vld [vmem:[#allocation8 + $0x114] sm:$0xf]
    %v2296 = vld [vmem:[#allocation8 + $0x118] sm:$0xf]
    %v2297 = vld [vmem:[#allocation8 + $0x11c] sm:$0xf]
    %v2298 = vld [vmem:[#allocation8 + $0x120] sm:$0xf]
    %v2299 = vld [vmem:[#allocation8 + $0x124] sm:$0xf]
    %v2300 = vld [vmem:[#allocation8 + $0x128] sm:$0xf]
    %v2301 = vld [vmem:[#allocation8 + $0x12c] sm:$0xf]
    %v2302 = vld [vmem:[#allocation8 + $0x130] sm:$0xf]
    %v2303 = vld [vmem:[#allocation8 + $0x134] sm:$0xf]
    %v2304 = vld [vmem:[#allocation8 + $0x138] sm:$0xf]
    %v2305 = vld [vmem:[#allocation8 + $0x13c] sm:$0xf]
    %v2386 = vunpack.c.l.b16 %v2226
    %v2387 = vunpack.c.l.b16 %v2227
    %v2388 = vunpack.c.l.b16 %v2228
    %v2389 = vunpack.c.l.b16 %v2229
    %v2390 = vunpack.c.l.b16 %v2230
    %v2391 = vunpack.c.l.b16 %v2231
    %v2392 = vunpack.c.l.b16 %v2232
    %v2393 = vunpack.c.l.b16 %v2233
    %v2394 = vunpack.c.l.b16 %v2234
    %v2395 = vunpack.c.l.b16 %v2235
    %v2396 = vunpack.c.l.b16 %v2236
    %v2397 = vunpack.c.l.b16 %v2237
    %v2398 = vunpack.c.l.b16 %v2238
    %v2399 = vunpack.c.l.b16 %v2239
    %v2400 = vunpack.c.l.b16 %v2240
    %v2401 = vunpack.c.l.b16 %v2241
    %v2402 = vunpack.c.l.b16 %v2242
    %v2403 = vunpack.c.l.b16 %v2243
    %v2404 = vunpack.c.l.b16 %v2244
    %v2405 = vunpack.c.l.b16 %v2245
    %v2406 = vunpack.c.l.b16 %v2246
    %v2407 = vunpack.c.l.b16 %v2247
    %v2408 = vunpack.c.l.b16 %v2248
    %v2409 = vunpack.c.l.b16 %v2249
    %v2410 = vunpack.c.l.b16 %v2250
    %v2411 = vunpack.c.l.b16 %v2251
    %v2412 = vunpack.c.l.b16 %v2252
    %v2413 = vunpack.c.l.b16 %v2253
    %v2414 = vunpack.c.l.b16 %v2254
    %v2415 = vunpack.c.l.b16 %v2255
    %v2416 = vunpack.c.l.b16 %v2256
    %v2417 = vunpack.c.l.b16 %v2257
    %v2418 = vunpack.c.l.b16 %v2258
    %v2419 = vunpack.c.l.b16 %v2259
    %v2420 = vunpack.c.l.b16 %v2260
    %v2421 = vunpack.c.l.b16 %v2261
    %v2422 = vunpack.c.l.b16 %v2262
    %v2423 = vunpack.c.l.b16 %v2263
    %v2424 = vunpack.c.l.b16 %v2264
    %v2425 = vunpack.c.l.b16 %v2265
    %v2426 = vunpack.c.l.b16 %v2266
    %v2427 = vunpack.c.l.b16 %v2267
    %v2428 = vunpack.c.l.b16 %v2268
    %v2429 = vunpack.c.l.b16 %v2269
    %v2430 = vunpack.c.l.b16 %v2270
    %v2431 = vunpack.c.l.b16 %v2271
    %v2432 = vunpack.c.l.b16 %v2272
    %v2433 = vunpack.c.l.b16 %v2273
    %v2434 = vunpack.c.l.b16 %v2274
    %v2435 = vunpack.c.l.b16 %v2275
    %v2436 = vunpack.c.l.b16 %v2276
    %v2437 = vunpack.c.l.b16 %v2277
    %v2438 = vunpack.c.l.b16 %v2278
    %v2439 = vunpack.c.l.b16 %v2279
    %v2440 = vunpack.c.l.b16 %v2280
    %v2441 = vunpack.c.l.b16 %v2281
    %v2442 = vunpack.c.l.b16 %v2282
    %v2443 = vunpack.c.l.b16 %v2283
    %v2444 = vunpack.c.l.b16 %v2284
    %v2445 = vunpack.c.l.b16 %v2285
    %v2446 = vunpack.c.l.b16 %v2286
    %v2447 = vunpack.c.l.b16 %v2287
    %v2448 = vunpack.c.l.b16 %v2288
    %v2449 = vunpack.c.l.b16 %v2289
    %v2450 = vunpack.c.l.b16 %v2290
    %v2451 = vunpack.c.l.b16 %v2291
    %v2452 = vunpack.c.l.b16 %v2292
    %v2453 = vunpack.c.l.b16 %v2293
    %v2454 = vunpack.c.l.b16 %v2294
    %v2455 = vunpack.c.l.b16 %v2295
    %v2456 = vunpack.c.l.b16 %v2296
    %v2457 = vunpack.c.l.b16 %v2297
    %v2458 = vunpack.c.l.b16 %v2298
    %v2459 = vunpack.c.l.b16 %v2299
    %v2460 = vunpack.c.l.b16 %v2300
    %v2461 = vunpack.c.l.b16 %v2301
    %v2462 = vunpack.c.l.b16 %v2302
    %v2463 = vunpack.c.l.b16 %v2303
    %v2464 = vunpack.c.l.b16 %v2304
    %v2465 = vunpack.c.l.b16 %v2305
    %v2466 = vpack.c.b16 %v2387, %v2386
    %v2467 = vpack.c.b16 %v2389, %v2388
    %v2468 = vpack.c.b16 %v2391, %v2390
    %v2469 = vpack.c.b16 %v2393, %v2392
    %v2470 = vpack.c.b16 %v2395, %v2394
    %v2471 = vpack.c.b16 %v2397, %v2396
    %v2472 = vpack.c.b16 %v2399, %v2398
    %v2473 = vpack.c.b16 %v2401, %v2400
    %v2474 = vpack.c.b16 %v2403, %v2402
    %v2475 = vpack.c.b16 %v2405, %v2404
    %v2476 = vpack.c.b16 %v2407, %v2406
    %v2477 = vpack.c.b16 %v2409, %v2408
    %v2478 = vpack.c.b16 %v2411, %v2410
    %v2479 = vpack.c.b16 %v2413, %v2412
    %v2480 = vpack.c.b16 %v2415, %v2414
    %v2481 = vpack.c.b16 %v2417, %v2416
    %v2482 = vpack.c.b16 %v2419, %v2418
    %v2483 = vpack.c.b16 %v2421, %v2420
    %v2484 = vpack.c.b16 %v2423, %v2422
    %v2485 = vpack.c.b16 %v2425, %v2424
    %v2486 = vpack.c.b16 %v2427, %v2426
    %v2487 = vpack.c.b16 %v2429, %v2428
    %v2488 = vpack.c.b16 %v2431, %v2430
    %v2489 = vpack.c.b16 %v2433, %v2432
    %v2490 = vpack.c.b16 %v2435, %v2434
    %v2491 = vpack.c.b16 %v2437, %v2436
    %v2492 = vpack.c.b16 %v2439, %v2438
    %v2493 = vpack.c.b16 %v2441, %v2440
    %v2494 = vpack.c.b16 %v2443, %v2442
    %v2495 = vpack.c.b16 %v2445, %v2444
    %v2496 = vpack.c.b16 %v2447, %v2446
    %v2497 = vpack.c.b16 %v2449, %v2448
    %v2498 = vpack.c.b16 %v2451, %v2450
    %v2499 = vpack.c.b16 %v2453, %v2452
    %v2500 = vpack.c.b16 %v2455, %v2454
    %v2501 = vpack.c.b16 %v2457, %v2456
    %v2502 = vpack.c.b16 %v2459, %v2458
    %v2503 = vpack.c.b16 %v2461, %v2460
    %v2504 = vpack.c.b16 %v2463, %v2462
    %v2505 = vpack.c.b16 %v2465, %v2464
    %2546 = vmatprep.subr.bf16.mxu0 0
    %2547 = vmatpush1.bf16.msra.mxu0 %v2473
    %2548 = vmatprep.subr.bf16.mxu0 0
    %2549 = vmatpush1.bf16.msra.mxu0 %v2472
    %2550 = vmatprep.subr.bf16.mxu0 0
    %2551 = vmatpush1.bf16.msra.mxu0 %v2471
    %2552 = vmatprep.subr.bf16.mxu0 0
    %2553 = vmatpush1.bf16.msra.mxu0 %v2470
    %2554 = vmatprep.subr.bf16.mxu0 0
    %2555 = vmatpush1.bf16.msra.mxu0 %v2469
    %2556 = vmatprep.subr.bf16.mxu0 0
    %2557 = vmatpush1.bf16.msra.mxu0 %v2468
    %2558 = vmatprep.subr.bf16.mxu0 0
    %2559 = vmatpush1.bf16.msra.mxu0 %v2467
    %2560 = vmatprep.subr.bf16.mxu0 0
    %2561 = vmatpush1.bf16.msra.mxu0 %v2466
    %2562 = vmatprep.subr.bf16.mxu0 0
    %2563 = vmatpush2.bf16.msra.mxu0 %v2481
    %2564 = vmatprep.subr.bf16.mxu0 0
    %2565 = vmatpush2.bf16.msra.mxu0 %v2480
    %2566 = vmatprep.subr.bf16.mxu0 0
    %2567 = vmatpush2.bf16.msra.mxu0 %v2479
    %2568 = vmatprep.subr.bf16.mxu0 0
    %2569 = vmatpush2.bf16.msra.mxu0 %v2478
    %2570 = vmatprep.subr.bf16.mxu0 0
    %2571 = vmatpush2.bf16.msra.mxu0 %v2477
    %2572 = vmatprep.subr.bf16.mxu0 0
    %2573 = vmatpush2.bf16.msra.mxu0 %v2476
    %2574 = vmatprep.subr.bf16.mxu0 0
    %2575 = vmatpush2.bf16.msra.mxu0 %v2475
    %2576 = vmatprep.subr.bf16.mxu0 0
    %2577 = vmatpush2.bf16.msra.mxu0 %v2474
    %2578 = vmatprep.mubr.bf16.mxu0 %v2222
    %2579 = vmatmul.mubr.bf16.gmra.mxu0 %v2221
    %v2580 = vpop.f32.mrf.mxu0
    %v2581 = vadd.f32 0.0, %v2580
    %v2582 = vpop.f32.mrf.mxu0
    %v2583 = vpop.f32.mrf.mxu0
    %v2584 = vpop.f32.mrf.mxu0
    %2585 = vdwg.mxu0
    %2586 = vmatprep.subr.bf16.mxu0 0
    %2587 = vmatpush1.bf16.msra.mxu0 %v2489
    %2588 = vmatprep.subr.bf16.mxu0 0
    %2589 = vmatpush1.bf16.msra.mxu0 %v2488
    %2590 = vmatprep.subr.bf16.mxu0 0
    %2591 = vmatpush1.bf16.msra.mxu0 %v2487
    %2592 = vmatprep.subr.bf16.mxu0 0
    %2593 = vmatpush1.bf16.msra.mxu0 %v2486
    %2594 = vmatprep.subr.bf16.mxu0 0
    %2595 = vmatpush1.bf16.msra.mxu0 %v2485
    %2596 = vmatprep.subr.bf16.mxu0 0
    %2597 = vmatpush1.bf16.msra.mxu0 %v2484
    %2598 = vmatprep.subr.bf16.mxu0 0
    %2599 = vmatpush1.bf16.msra.mxu0 %v2483
    %2600 = vmatprep.subr.bf16.mxu0 0
    %2601 = vmatpush1.bf16.msra.mxu0 %v2482
    %2602 = vmatprep.subr.bf16.mxu0 0
    %2603 = vmatpush2.bf16.msra.mxu0 %v2497
    %2604 = vmatprep.subr.bf16.mxu0 0
    %2605 = vmatpush2.bf16.msra.mxu0 %v2496
    %2606 = vmatprep.subr.bf16.mxu0 0
    %2607 = vmatpush2.bf16.msra.mxu0 %v2495
    %2608 = vmatprep.subr.bf16.mxu0 0
    %2609 = vmatpush2.bf16.msra.mxu0 %v2494
    %2610 = vmatprep.subr.bf16.mxu0 0
    %2611 = vmatpush2.bf16.msra.mxu0 %v2493
    %2612 = vmatprep.subr.bf16.mxu0 0
    %2613 = vmatpush2.bf16.msra.mxu0 %v2492
    %2614 = vmatprep.subr.bf16.mxu0 0
    %2615 = vmatpush2.bf16.msra.mxu0 %v2491
    %2616 = vmatprep.subr.bf16.mxu0 0
    %2617 = vmatpush2.bf16.msra.mxu0 %v2490
    %2618 = vmatprep.mubr.bf16.mxu0 %v2224
    %2619 = vmatmul.mubr.bf16.gmra.mxu0 %v2223
    %v2620 = vpop.f32.mrf.mxu0
    %v2621 = vadd.f32 %v2581, %v2620
    %v2622 = vpop.f32.mrf.mxu0
    %v2623 = vpop.f32.mrf.mxu0
    %v2624 = vpop.f32.mrf.mxu0
    %2625 = vdwg.mxu0
    %2626 = vmatprep.subr.bf16.mxu0 0
    %2627 = vmatpush1.bf16.msra.mxu0 %v2505
    %2628 = vmatprep.subr.bf16.mxu0 0
    %2629 = vmatpush1.bf16.msra.mxu0 %v2504
    %2630 = vmatprep.subr.bf16.mxu0 0
    %2631 = vmatpush1.bf16.msra.mxu0 %v2503
    %2632 = vmatprep.subr.bf16.mxu0 0
    %2633 = vmatpush1.bf16.msra.mxu0 %v2502
    %2634 = vmatprep.subr.bf16.mxu0 0
    %2635 = vmatpush1.bf16.msra.mxu0 %v2501
    %2636 = vmatprep.subr.bf16.mxu0 0
    %2637 = vmatpush1.bf16.msra.mxu0 %v2500
    %2638 = vmatprep.subr.bf16.mxu0 0
    %2639 = vmatpush1.bf16.msra.mxu0 %v2499
    %2640 = vmatprep.subr.bf16.mxu0 0
    %2641 = vmatpush1.bf16.msra.mxu0 %v2498
    %2642 = vmatprep.subr.bf16.mxu0 0
    %2643 = vmatpush2.bf16.msra.mxu0 0
    %2644 = vmatprep.subr.bf16.mxu0 0
    %2645 = vmatpush2.bf16.msra.mxu0 0
    %2646 = vmatprep.subr.bf16.mxu0 0
    %2647 = vmatpush2.bf16.msra.mxu0 0
    %2648 = vmatprep.subr.bf16.mxu0 0
    %2649 = vmatpush2.bf16.msra.mxu0 0
    %2650 = vmatprep.subr.bf16.mxu0 0
    %2651 = vmatpush2.bf16.msra.mxu0 0
    %2652 = vmatprep.subr.bf16.mxu0 0
    %2653 = vmatpush2.bf16.msra.mxu0 0
    %2654 = vmatprep.subr.bf16.mxu0 0
    %2655 = vmatpush2.bf16.msra.mxu0 0
    %2656 = vmatprep.subr.bf16.mxu0 0
    %2657 = vmatpush2.bf16.msra.mxu0 0
    %2658 = vmatprep.mubr.bf16.mxu0 0
    %2659 = vmatmul.mubr.bf16.gmra.mxu0 %v2225
    %v2660 = vpop.f32.mrf.mxu0
    %v2661 = vadd.f32 %v2621, %v2660
    %v2662 = vpop.f32.mrf.mxu0
    %v2663 = vpop.f32.mrf.mxu0
    %v2664 = vpop.f32.mrf.mxu0
    %2665 = vdwg.mxu0
    %v2666 = vmul.f32 %v2661, 0.5
    %v2667 = vtanh.pop %v2666
    %v2668 = vmul.f32 %v2667, 0.5
    %v2669 = vadd.f32 %v2668, 0.5
    %v2670 = vpack.c.bf16 %v2669, %v2669
    %v2671 = vld [vmem:[#allocation10] sm:$0xf]
    %v2672 = vld [vmem:[#allocation10 + $0x4] sm:$0xf]
    %v2673 = vld [vmem:[#allocation10 + $0x8] sm:$0xf]
    %v2674 = vld [vmem:[#allocation10 + $0xc] sm:$0xf]
    %v2675 = vld [vmem:[#allocation10 + $0x10] sm:$0xf]
    %v2676 = vld [vmem:[#allocation10 + $0x14] sm:$0xf]
    %v2677 = vld [vmem:[#allocation10 + $0x18] sm:$0xf]
    %v2678 = vld [vmem:[#allocation10 + $0x1c] sm:$0xf]
    %v2679 = vld [vmem:[#allocation10 + $0x20] sm:$0xf]
    %v2680 = vld [vmem:[#allocation10 + $0x24] sm:$0xf]
    %v2681 = vld [vmem:[#allocation10 + $0x28] sm:$0xf]
    %v2682 = vld [vmem:[#allocation10 + $0x2c] sm:$0xf]
    %v2683 = vld [vmem:[#allocation10 + $0x30] sm:$0xf]
    %v2684 = vld [vmem:[#allocation10 + $0x34] sm:$0xf]
    %v2685 = vld [vmem:[#allocation10 + $0x38] sm:$0xf]
    %v2686 = vld [vmem:[#allocation10 + $0x3c] sm:$0xf]
    %v2703 = vunpack.c.l.b16 %v2671
    %v2704 = vunpack.c.l.b16 %v2672
    %v2705 = vunpack.c.l.b16 %v2673
    %v2706 = vunpack.c.l.b16 %v2674
    %v2707 = vunpack.c.l.b16 %v2675
    %v2708 = vunpack.c.l.b16 %v2676
    %v2709 = vunpack.c.l.b16 %v2677
    %v2710 = vunpack.c.l.b16 %v2678
    %v2711 = vunpack.c.l.b16 %v2679
    %v2712 = vunpack.c.l.b16 %v2680
    %v2713 = vunpack.c.l.b16 %v2681
    %v2714 = vunpack.c.l.b16 %v2682
    %v2715 = vunpack.c.l.b16 %v2683
    %v2716 = vunpack.c.l.b16 %v2684
    %v2717 = vunpack.c.l.b16 %v2685
    %v2718 = vunpack.c.l.b16 %v2686
    %v2719 = vpack.c.b16 %v2704, %v2703
    %v2720 = vpack.c.b16 %v2706, %v2705
    %v2721 = vpack.c.b16 %v2708, %v2707
    %v2722 = vpack.c.b16 %v2710, %v2709
    %v2723 = vpack.c.b16 %v2712, %v2711
    %v2724 = vpack.c.b16 %v2714, %v2713
    %v2725 = vpack.c.b16 %v2716, %v2715
    %v2726 = vpack.c.b16 %v2718, %v2717
    %2735 = vmatprep.subr.bf16.mxu0 0
    %2736 = vmatpush1.bf16.msra.mxu0 %v2726
    %2737 = vmatprep.subr.bf16.mxu0 0
    %2738 = vmatpush1.bf16.msra.mxu0 %v2725
    %2739 = vmatprep.subr.bf16.mxu0 0
    %2740 = vmatpush1.bf16.msra.mxu0 %v2724
    %2741 = vmatprep.subr.bf16.mxu0 0
    %2742 = vmatpush1.bf16.msra.mxu0 %v2723
    %2743 = vmatprep.subr.bf16.mxu0 0
    %2744 = vmatpush1.bf16.msra.mxu0 %v2722
    %2745 = vmatprep.subr.bf16.mxu0 0
    %2746 = vmatpush1.bf16.msra.mxu0 %v2721
    %2747 = vmatprep.subr.bf16.mxu0 0
    %2748 = vmatpush1.bf16.msra.mxu0 %v2720
    %2749 = vmatprep.subr.bf16.mxu0 0
    %2750 = vmatpush1.bf16.msra.mxu0 %v2719
    %2751 = vmatprep.subr.bf16.mxu0 0
    %2752 = vmatpush2.bf16.msra.mxu0 0
    %2753 = vmatprep.subr.bf16.mxu0 0
    %2754 = vmatpush2.bf16.msra.mxu0 0
    %2755 = vmatprep.subr.bf16.mxu0 0
    %2756 = vmatpush2.bf16.msra.mxu0 0
    %2757 = vmatprep.subr.bf16.mxu0 0
    %2758 = vmatpush2.bf16.msra.mxu0 0
    %2759 = vmatprep.subr.bf16.mxu0 0
    %2760 = vmatpush2.bf16.msra.mxu0 0
    %2761 = vmatprep.subr.bf16.mxu0 0
    %2762 = vmatpush2.bf16.msra.mxu0 0
    %2763 = vmatprep.subr.bf16.mxu0 0
    %2764 = vmatpush2.bf16.msra.mxu0 0
    %2765 = vmatprep.subr.bf16.mxu0 0
    %2766 = vmatpush2.bf16.msra.mxu0 0
    %2767 = vmatprep.mubr.bf16.mxu0 0
    %2768 = vmatmul.mubr.bf16.gmra.mxu0 %v2670
    %v2769 = vpop.f32.mrf.mxu0
    %v2770 = vadd.f32 0.0, %v2769
    %v2771 = vpop.f32.mrf.mxu0
    %v2772 = vpop.f32.mrf.mxu0
    %v2773 = vpop.f32.mrf.mxu0
    %2774 = vdwg.mxu0
    %v2775 = vlaneseq
    %v2776 = vand.u32 %v2775, 127
    %vm2777 = vcmp.lt.s32.totalorder %v2776, 10
    %v2778 = vsel %vm2777, %v2770, -inf
    %2779 = vmax.xlane.f32.xlu0 %v2778
    %v2780 = vpop.xlane.xlu0 %2779
    %v2781 = vsub.f32 %v2770, %v2780
    %v2782 = vmul.f32 %v2781, 1.442695
    %v2783 = vpow.pop %v2782
    %v2784 = vsel %vm2777, %v2783, 0.0
    %2785 = vadd.xlane.f32.xlu0 %v2784
    %v2786 = vpop.xlane.xlu0 %2785
    %v2787 = vlog2.pop %v2786
    %v2788 = vmul.f32 %v2787, 0.6931472
    %v2789 = vadd.f32 %v2788, %v2780
    %v2790 = vsub.f32 %v2770, %v2789
    %v2791 = vsel %vm2777, %v2790, 0.0
    %2792 = vst [vmem:[#allocation11] sm:$0xff] %v2791
    // Predicated region
    $region42: #{tpu_custom_call.1} parent=1 // pred_check
      _
    $region43: #{tpu_custom_call.1} parent=1 // pred_check_branch
      %2794 = sbr.rel (0) target = $region45
    $region44: #{tpu_custom_call.1} parent=1 // pred_region
      %s2796 = ssub.s32 128, 128
      %2797 = vsyncadd [#allocation4], %s2796
      %s2799 = sshll.u32 [#allocation11], 4
      %s2800 = int_to_ptr.vmem [resolvable:$true] %s2799
      %2802 = dma.vmem_to_hbm [thread:$0]  %s2800, 128, %s5, [#allocation4]
    $region45: #{tpu_custom_call.1} parent=1 // pred_fallthru
      _
    // Predicated region
    $region46: #{tpu_custom_call.1} parent=1 // pred_check
      _
    $region47: #{tpu_custom_call.1} parent=1 // pred_check_branch
      %2804 = sbr.rel (0) target = $region49
    $region48: #{tpu_custom_call.1} parent=1 // pred_region
      %2805 = dma.done [#allocation4], 128
    $region49: #{tpu_custom_call.1} parent=1 // pred_fallthru
      _
    %2806 = vsyncpa [#allocation3], 1
    %2807 = vsyncpa [#allocation6], 1
    %2808 = vsyncpa [#allocation9], 1
    %2809 = vsyncpa [#allocation4], 1

</llo_original>
